<compile_context>
chip_gen: v7x
topology: tpu7x:2x2x1
jax: 0.10.0
libtpu: 0.0.40
codegen_flags: <defaults>
</compile_context>

<pallas_src>
import jax
import jax.numpy as jnp
import numpy as np
from jax import lax
from jax.experimental import pallas as pl
from jax.experimental.pallas import tpu as pltpu

_INV_1P1 = 1.0 / 1.1


# ------------------------------- kernel ------------------------------------
def _make_kernel(n_layers, out_dim, beta, has_cond):
    """Ref order: eps, [x], W0e_aug, [W0x], b0, (W_l, b_l, blk_l)*, W_L, b_L,
    WL_sel, w0_cols, out, j."""
    n_mid = n_layers - 2          # hidden layers beyond the first

    def kernel(*refs):
        it = iter(refs)
        eps_ref = next(it)
        x_ref = next(it) if has_cond else None
        w0e_ref = next(it)
        w0x_ref = next(it) if has_cond else None
        b0_ref = next(it)
        mid = [(next(it), next(it), next(it)) for _ in range(n_mid)]
        wlast_ref, blast_ref = next(it), next(it)
        wlsel_ref, w0cols_ref = next(it), next(it)
        out_ref, j_ref = next(it), next(it)

        def tile_rows(v):
            # (d, tb) -> (out_dim*d, tb), d_out-major row order (matches the
            # kron/selector constants built in the wrapper).
            return jnp.concatenate([v] * out_dim, axis=0)

        # ---- layer 0: eps transpose folded into the matmul ([I; W0_eps] @ eps^T)
        eps = eps_ref[...].astype(jnp.float32)                     # (tb, out_dim)
        r0 = lax.dot_general(w0e_ref[...], eps, (((1,), (1,)), ((), ())),
                             preferred_element_type=jnp.float32)   # (out+h0, tb)
        eps_t = r0[:out_dim]                                       # (out_dim, tb)
        a = r0[out_dim:] + b0_ref[...]                             # (h0, tb)
        if has_cond:
            xv = x_ref[...].astype(jnp.float32)                    # (tb, cond)
            a = a + lax.dot_general(w0x_ref[...], xv, (((1,), (1,)), ((), ())),
                                    preferred_element_type=jnp.float32)

        # LipSwish + derivative: one sigmoid per hidden layer, shared.
        s = jax.nn.sigmoid(beta * a)
        h = a * s * _INV_1P1
        hp = beta * h + s * (_INV_1P1 - beta * h)
        # Batched Jacobian-diagonal chain: V[(d*h0+m), n] = hp0[m,n] * W0[m,d].
        V = tile_rows(hp) * w0cols_ref[...]

        # ---- remaining hidden layers
        for (w_ref, b_ref, blk_ref) in mid:
            a = jnp.dot(w_ref[...], h, preferred_element_type=jnp.float32) + b_ref[...]
            s = jax.nn.sigmoid(beta * a)
            h = a * s * _INV_1P1
            hp = beta * h + s * (_INV_1P1 - beta * h)
            # kron(I_out, W_l) @ V collapses out_dim tiny matmuls into one.
            V = tile_rows(hp) * jnp.dot(blk_ref[...], V,
                                        preferred_element_type=jnp.float32)

        # ---- output layer + residual (lane-dense (out_dim, tb) store)
        g = jnp.dot(wlast_ref[...], h, preferred_element_type=jnp.float32) + blast_ref[...]
        out_ref[...] = (eps_t + g).astype(out_ref.dtype)

        # ---- log|diag(J) + 1|: one selector matmul, one fused log pass,
        #      one sublane reduce (instead of 8 partial (1, tb) passes).
        diag = jnp.dot(wlsel_ref[...], V, preferred_element_type=jnp.float32) + 1.0
        j_ref[...] = jnp.sum(jnp.log(jnp.abs(diag)), axis=0,
                             keepdims=True).astype(j_ref.dtype)

    return kernel


# ------------------------------- wrapper ------------------------------------
def graphical_lipschitz_residual_block(eps, x, weights, biases, *,
                                       beta=1.0, batch_tile=1024,
                                       stream_dtype=jnp.float32):
    """Returns (eps + g(concat(eps, x)), sum_d log|diag(J)_d + 1|)."""
    N, out_dim = eps.shape
    n_layers = len(weights)
    assert n_layers >= 2, "expected at least one hidden layer"
    h0, in_total = weights[0].shape
    cond_dim = in_total - out_dim
    has_cond = cond_dim > 0
    if has_cond:
        assert x is not None and x.shape == (N, cond_dim)

    W = [w.astype(jnp.float32) for w in weights]
    b = [bb.reshape(-1, 1).astype(jnp.float32) for bb in biases]

    # Batch tile: multiple of 128 so the batch rides the lane axis.  Pick it so
    # the number of tiles is >= 2 (and even) on v7x to feed both TensorCores.
    tb = max(128, (int(batch_tile) // 128) * 128)
    tb = min(tb, ((N + 127) // 128) * 128)
    n_tiles = -(-N // tb)
    Np = n_tiles * tb

    # eps stays f32 (exact residual); only the conditional stream may be bf16.
    eps_in = eps.astype(jnp.float32)
    x_in = x.astype(stream_dtype) if has_cond else None
    if Np != N:
        eps_in = jnp.pad(eps_in, ((0, Np - N), (0, 0)))
        if has_cond:
            x_in = jnp.pad(x_in, ((0, Np - N), (0, 0)))

    # ---- batch-independent constants, built once outside the kernel ----
    W0_eps = W[0][:, :out_dim]                                    # (h0, out_dim)
    w0e_aug = jnp.concatenate(
        [jnp.eye(out_dim, dtype=jnp.float32), W0_eps], axis=0)    # (out+h0, out)
    w0_cols = jnp.transpose(W0_eps).reshape(out_dim * h0, 1)      # (out*h0, 1)
    blk = [jnp.kron(jnp.eye(out_dim, dtype=jnp.float32), W[l])
           for l in range(1, n_layers - 1)]                       # (out*d_l, out*d_{l-1})
    WL = W[n_layers - 1]
    h_last = WL.shape[1]
    wl_sel = (jnp.eye(out_dim, dtype=jnp.float32)[:, :, None]
              * WL[:, None, :]).reshape(out_dim, out_dim * h_last)

    def const(shape):
        return pl.BlockSpec(shape, lambda i: (0, 0))

    args, in_specs = [], []
    args.append(eps_in)
    in_specs.append(pl.BlockSpec((tb, out_dim), lambda i: (i, 0)))
    if has_cond:
        args.append(x_in)
        in_specs.append(pl.BlockSpec((tb, cond_dim), lambda i: (i, 0)))
    args.append(w0e_aug); in_specs.append(const(w0e_aug.shape))
    if has_cond:
        W0_x = W[0][:, out_dim:]
        args.append(W0_x); in_specs.append(const(W0_x.shape))
    args.append(b[0]); in_specs.append(const(b[0].shape))
    for l in range(1, n_layers - 1):
        args += [W[l], b[l], blk[l - 1]]
        in_specs += [const(W[l].shape), const(b[l].shape), const(blk[l - 1].shape)]
    args += [WL, b[n_layers - 1], wl_sel, w0_cols]
    in_specs += [const(WL.shape), const(b[n_layers - 1].shape),
                 const(wl_sel.shape), const(w0_cols.shape)]

    out_specs = (pl.BlockSpec((out_dim, tb), lambda i: (0, i)),
                 pl.BlockSpec((1, tb), lambda i: (0, i)))
    out_shape = (jax.ShapeDtypeStruct((out_dim, Np), jnp.float32),
                 jax.ShapeDtypeStruct((1, Np), jnp.float32))

    y_t, j_row = pl.pallas_call(
        _make_kernel(n_layers, out_dim, beta, has_cond),
        grid=(n_tiles,),
        in_specs=in_specs,
        out_specs=out_specs,
        out_shape=out_shape,
        compiler_params=pltpu.CompilerParams(
            dimension_semantics=("parallel",),
            # Only very large tiles need a raised limit (v5e scoped default is 16 MiB).
            vmem_limit_bytes=(48 * 1024 * 1024 if tb > 4096 else None)),
    )(*args)

    # Layout plumbing only: kernel outputs are lane-dense (batch on lanes).
    # Consumers that accept (out_dim, N) / the (1, N) logdet row can skip this.
    y = jnp.transpose(y_t)[:N]
    j = j_row[0, :N]
    return y, j


# --------------------------- pure-JAX reference ------------------------------
def _lipswish(x, beta):
    s = jax.nn.sigmoid(beta * x)
    return x * s / 1.1


def _lipswish_prime(x, beta):
    s = jax.nn.sigmoid(beta * x)
    f = x * s / 1.1
    return beta * f + s * (1.0 / 1.1 - beta * f)


def _reference(eps, x, weights, biases, beta=1.0):
    inp = jnp.concatenate([eps, x], axis=1) if x is not None else eps
    n_layers = len(weights)
    out_dim = eps.shape[1]
    h = inp
    preacts = []
    g = None
    for l in range(n_layers):
        a = h @ weights[l].T + biases[l]
        if l < n_layers - 1:
            preacts.append(a)
            h = _lipswish(a, beta)
        else:
            g = a
    N = eps.shape[0]
    J = jnp.broadcast_to(weights[0][:, :out_dim][None],
                         (N, weights[0].shape[0], out_dim))
    for l in range(1, n_layers):
        hp = _lipswish_prime(preacts[l - 1], beta)
        J = jnp.einsum('oh,bhd->bod', weights[l], J * hp[:, :, None])
    diag = jnp.einsum('bdd->bd', J) + 1.0
    return eps + g, jnp.sum(jnp.log(jnp.abs(diag)), axis=1)


# --------------------------------- main --------------------------------------
if __name__ == "__main__":
    # Small shapes consistent with the module:
    #   eps features = 8, conditional features = 8, hidden_dims = [16, 16].
    N, in_dim, cond_dim = 1024, 8, 8
    hidden_dims = [16, 16]
    in_total = in_dim + cond_dim
    out_dim = in_dim
    beta = 1.0  # LipSwish beta (initialized to 1.0 in the module)

    l1 = [in_total] + hidden_dims
    l2 = hidden_dims + [out_dim]

    key = jax.random.PRNGKey(0)
    keys = jax.random.split(key, 2 * len(l1) + 2)
    weights, biases = [], []
    for m, (din, dout) in enumerate(zip(l1, l2)):
        weights.append(0.2 * jax.random.normal(keys[2 * m], (dout, din),
                                               dtype=jnp.float32))
        biases.append(0.05 * jax.random.normal(keys[2 * m + 1], (dout,),
                                               dtype=jnp.float32))

    eps = jax.random.normal(keys[-2], (N, in_dim), dtype=jnp.float32)
    x = jax.random.normal(keys[-1], (N, cond_dim), dtype=jnp.float32)

    # batch_tile=512 -> 2 fat tiles for N=1024 (one per v7x TensorCore);
    # x is streamed in bf16, eps / weights / accumulation stay f32.
    y, j = graphical_lipschitz_residual_block(eps, x, weights, biases,
                                              beta=beta, batch_tile=512,
                                              stream_dtype=jnp.bfloat16)
    y = jax.block_until_ready(y)
    j = jax.block_until_ready(j)

    y_ref, j_ref = _reference(eps, x, weights, biases, beta=beta)
    np.testing.assert_allclose(np.asarray(y), np.asarray(y_ref),
                               rtol=1e-2, atol=1e-3)
    np.testing.assert_allclose(np.asarray(j), np.asarray(j_ref),
                               rtol=1e-2, atol=1e-3)
    assert y.shape == (N, out_dim) and j.shape == (N,)

    print("KERNEL_OK")
</pallas_src>

<mosaic_0001>
module attributes {stable_mosaic.version = 11 : i64} {
  func.func @kernel(%arg0: i32, %arg1: memref<512x8xf32, #tpu.memory_space<vmem>>, %arg2: memref<512x8xbf16, #tpu.memory_space<vmem>>, %arg3: memref<24x8xf32, #tpu.memory_space<vmem>>, %arg4: memref<16x8xf32, #tpu.memory_space<vmem>>, %arg5: memref<16x1xf32, #tpu.memory_space<vmem>>, %arg6: memref<16x16xf32, #tpu.memory_space<vmem>>, %arg7: memref<16x1xf32, #tpu.memory_space<vmem>>, %arg8: memref<128x128xf32, #tpu.memory_space<vmem>>, %arg9: memref<8x16xf32, #tpu.memory_space<vmem>>, %arg10: memref<8x1xf32, #tpu.memory_space<vmem>>, %arg11: memref<8x128xf32, #tpu.memory_space<vmem>>, %arg12: memref<128x1xf32, #tpu.memory_space<vmem>>, %arg13: memref<8x512xf32, #tpu.memory_space<vmem>>, %arg14: memref<1x512xf32, #tpu.memory_space<vmem>>) attributes {dimension_semantics = [#tpu.dimension_semantics<parallel>], iteration_bounds = array<i64: 2>, scalar_prefetch = 0 : i64, scratch_operands = 0 : i64, tpu.core_type = #tpu.core_type<tc>, window_params = [{transform_indices = @transform_0, window_bounds = array<i64: 512, 8>}, {transform_indices = @transform_1, window_bounds = array<i64: 512, 8>}, {pipeline_mode = #tpu.pipeline_mode<synchronous>, transform_indices = @transform_2, window_bounds = array<i64: 24, 8>}, {pipeline_mode = #tpu.pipeline_mode<synchronous>, transform_indices = @transform_3, window_bounds = array<i64: 16, 8>}, {pipeline_mode = #tpu.pipeline_mode<synchronous>, transform_indices = @transform_4, window_bounds = array<i64: 16, 1>}, {pipeline_mode = #tpu.pipeline_mode<synchronous>, transform_indices = @transform_5, window_bounds = array<i64: 16, 16>}, {pipeline_mode = #tpu.pipeline_mode<synchronous>, transform_indices = @transform_6, window_bounds = array<i64: 16, 1>}, {pipeline_mode = #tpu.pipeline_mode<synchronous>, transform_indices = @transform_7, window_bounds = array<i64: 128, 128>}, {pipeline_mode = #tpu.pipeline_mode<synchronous>, transform_indices = @transform_8, window_bounds = array<i64: 8, 16>}, {pipeline_mode = #tpu.pipeline_mode<synchronous>, transform_indices = @transform_9, window_bounds = array<i64: 8, 1>}, {pipeline_mode = #tpu.pipeline_mode<synchronous>, transform_indices = @transform_10, window_bounds = array<i64: 8, 128>}, {pipeline_mode = #tpu.pipeline_mode<synchronous>, transform_indices = @transform_11, window_bounds = array<i64: 128, 1>}, {transform_indices = @transform_12, window_bounds = array<i64: 8, 512>}, {transform_indices = @transform_13, window_bounds = array<i64: 1, 512>}]} {
    %c0 = arith.constant 0 : index
    %c0_0 = arith.constant 0 : index
    %0 = vector.load %arg1[%c0, %c0_0] : memref<512x8xf32, #tpu.memory_space<vmem>>, vector<512x8xf32>
    %c0_1 = arith.constant 0 : index
    %c0_2 = arith.constant 0 : index
    %1 = vector.load %arg3[%c0_1, %c0_2] : memref<24x8xf32, #tpu.memory_space<vmem>>, vector<24x8xf32>
    %cst = arith.constant dense<0.000000e+00> : vector<24x512xf32>
    %2 = tpu.matmul %1, %0, %cst {dimension_numbers = #tpu.dot_dimension_numbers<[1], [1], [0], [0], [0, 0, 1, 0], [], []>} : vector<24x8xf32>, vector<512x8xf32>, vector<24x512xf32> -> vector<24x512xf32>
    %3 = vector.extract_strided_slice %2 {offsets = [0, 0], sizes = [8, 512], strides = [1, 1]} : vector<24x512xf32> to vector<8x512xf32>
    %4 = vector.extract_strided_slice %2 {offsets = [8, 0], sizes = [16, 512], strides = [1, 1]} : vector<24x512xf32> to vector<16x512xf32>
    %c0_3 = arith.constant 0 : index
    %c0_4 = arith.constant 0 : index
    %5 = vector.load %arg5[%c0_3, %c0_4] : memref<16x1xf32, #tpu.memory_space<vmem>>, vector<16x1xf32>
    %6 = vector.broadcast %5 : vector<16x1xf32> to vector<16x512xf32>
    %7 = arith.addf %4, %6 : vector<16x512xf32>
    %c0_5 = arith.constant 0 : index
    %c0_6 = arith.constant 0 : index
    %8 = vector.load %arg2[%c0_5, %c0_6] : memref<512x8xbf16, #tpu.memory_space<vmem>>, vector<512x8xbf16>
    %9 = arith.extf %8 : vector<512x8xbf16> to vector<512x8xf32>
    %c0_7 = arith.constant 0 : index
    %c0_8 = arith.constant 0 : index
    %10 = vector.load %arg4[%c0_7, %c0_8] : memref<16x8xf32, #tpu.memory_space<vmem>>, vector<16x8xf32>
    %cst_9 = arith.constant dense<0.000000e+00> : vector<16x512xf32>
    %11 = tpu.matmul %10, %9, %cst_9 {dimension_numbers = #tpu.dot_dimension_numbers<[1], [1], [0], [0], [0, 0, 1, 0], [], []>} : vector<16x8xf32>, vector<512x8xf32>, vector<16x512xf32> -> vector<16x512xf32>
    %12 = arith.addf %7, %11 : vector<16x512xf32>
    %cst_10 = arith.constant 1.000000e+00 : f32
    %13 = vector.broadcast %cst_10 : f32 to vector<16x512xf32>
    %14 = arith.mulf %13, %12 : vector<16x512xf32>
    %15 = arith.negf %14 : vector<16x512xf32>
    %16 = math.exp %15 : vector<16x512xf32>
    %cst_11 = arith.constant 1.000000e+00 : f32
    %17 = vector.broadcast %cst_11 : f32 to vector<16x512xf32>
    %18 = arith.addf %17, %16 : vector<16x512xf32>
    %19 = arith.divf %17, %18 : vector<16x512xf32>
    %20 = arith.mulf %12, %19 : vector<16x512xf32>
    %cst_12 = arith.constant 0.909090936 : f32
    %21 = vector.broadcast %cst_12 : f32 to vector<16x512xf32>
    %22 = arith.mulf %20, %21 : vector<16x512xf32>
    %cst_13 = arith.constant 1.000000e+00 : f32
    %23 = vector.broadcast %cst_13 : f32 to vector<16x512xf32>
    %24 = arith.mulf %23, %22 : vector<16x512xf32>
    %cst_14 = arith.constant 1.000000e+00 : f32
    %25 = vector.broadcast %cst_14 : f32 to vector<16x512xf32>
    %26 = arith.mulf %25, %22 : vector<16x512xf32>
    %cst_15 = arith.constant 0.909090936 : f32
    %27 = vector.broadcast %cst_15 : f32 to vector<16x512xf32>
    %28 = arith.subf %27, %26 : vector<16x512xf32>
    %29 = arith.mulf %19, %28 : vector<16x512xf32>
    %30 = arith.addf %24, %29 : vector<16x512xf32>
    %31 = tpu.concatenate %30, %30, %30, %30, %30, %30, %30, %30 in 0 : vector<16x512xf32>, vector<16x512xf32>, vector<16x512xf32>, vector<16x512xf32>, vector<16x512xf32>, vector<16x512xf32>, vector<16x512xf32>, vector<16x512xf32> -> vector<128x512xf32>
    %c0_16 = arith.constant 0 : index
    %c0_17 = arith.constant 0 : index
    %32 = vector.load %arg12[%c0_16, %c0_17] : memref<128x1xf32, #tpu.memory_space<vmem>>, vector<128x1xf32>
    %33 = vector.broadcast %32 : vector<128x1xf32> to vector<128x512xf32>
    %34 = arith.mulf %31, %33 : vector<128x512xf32>
    %c0_18 = arith.constant 0 : index
    %c0_19 = arith.constant 0 : index
    %35 = vector.load %arg6[%c0_18, %c0_19] : memref<16x16xf32, #tpu.memory_space<vmem>>, vector<16x16xf32>
    %cst_20 = arith.constant dense<0.000000e+00> : vector<16x512xf32>
    %36 = tpu.matmul %35, %22, %cst_20 {dimension_numbers = #tpu.dot_dimension_numbers<[1], [0], [0], [1], [0, 0, 1, 1], [], []>} : vector<16x16xf32>, vector<16x512xf32>, vector<16x512xf32> -> vector<16x512xf32>
    %c0_21 = arith.constant 0 : index
    %c0_22 = arith.constant 0 : index
    %37 = vector.load %arg7[%c0_21, %c0_22] : memref<16x1xf32, #tpu.memory_space<vmem>>, vector<16x1xf32>
    %38 = vector.broadcast %37 : vector<16x1xf32> to vector<16x512xf32>
    %39 = arith.addf %36, %38 : vector<16x512xf32>
    %cst_23 = arith.constant 1.000000e+00 : f32
    %40 = vector.broadcast %cst_23 : f32 to vector<16x512xf32>
    %41 = arith.mulf %40, %39 : vector<16x512xf32>
    %42 = arith.negf %41 : vector<16x512xf32>
    %43 = math.exp %42 : vector<16x512xf32>
    %cst_24 = arith.constant 1.000000e+00 : f32
    %44 = vector.broadcast %cst_24 : f32 to vector<16x512xf32>
    %45 = arith.addf %44, %43 : vector<16x512xf32>
    %46 = arith.divf %44, %45 : vector<16x512xf32>
    %47 = arith.mulf %39, %46 : vector<16x512xf32>
    %cst_25 = arith.constant 0.909090936 : f32
    %48 = vector.broadcast %cst_25 : f32 to vector<16x512xf32>
    %49 = arith.mulf %47, %48 : vector<16x512xf32>
    %cst_26 = arith.constant 1.000000e+00 : f32
    %50 = vector.broadcast %cst_26 : f32 to vector<16x512xf32>
    %51 = arith.mulf %50, %49 : vector<16x512xf32>
    %cst_27 = arith.constant 1.000000e+00 : f32
    %52 = vector.broadcast %cst_27 : f32 to vector<16x512xf32>
    %53 = arith.mulf %52, %49 : vector<16x512xf32>
    %cst_28 = arith.constant 0.909090936 : f32
    %54 = vector.broadcast %cst_28 : f32 to vector<16x512xf32>
    %55 = arith.subf %54, %53 : vector<16x512xf32>
    %56 = arith.mulf %46, %55 : vector<16x512xf32>
    %57 = arith.addf %51, %56 : vector<16x512xf32>
    %58 = tpu.concatenate %57, %57, %57, %57, %57, %57, %57, %57 in 0 : vector<16x512xf32>, vector<16x512xf32>, vector<16x512xf32>, vector<16x512xf32>, vector<16x512xf32>, vector<16x512xf32>, vector<16x512xf32>, vector<16x512xf32> -> vector<128x512xf32>
    %c0_29 = arith.constant 0 : index
    %c0_30 = arith.constant 0 : index
    %59 = vector.load %arg8[%c0_29, %c0_30] : memref<128x128xf32, #tpu.memory_space<vmem>>, vector<128x128xf32>
    %cst_31 = arith.constant dense<0.000000e+00> : vector<128x512xf32>
    %60 = tpu.matmul %59, %34, %cst_31 {dimension_numbers = #tpu.dot_dimension_numbers<[1], [0], [0], [1], [0, 0, 1, 1], [], []>} : vector<128x128xf32>, vector<128x512xf32>, vector<128x512xf32> -> vector<128x512xf32>
    %61 = arith.mulf %58, %60 : vector<128x512xf32>
    %c0_32 = arith.constant 0 : index
    %c0_33 = arith.constant 0 : index
    %62 = vector.load %arg9[%c0_32, %c0_33] : memref<8x16xf32, #tpu.memory_space<vmem>>, vector<8x16xf32>
    %cst_34 = arith.constant dense<0.000000e+00> : vector<8x512xf32>
    %63 = tpu.matmul %62, %49, %cst_34 {dimension_numbers = #tpu.dot_dimension_numbers<[1], [0], [0], [1], [0, 0, 1, 1], [], []>} : vector<8x16xf32>, vector<16x512xf32>, vector<8x512xf32> -> vector<8x512xf32>
    %c0_35 = arith.constant 0 : index
    %c0_36 = arith.constant 0 : index
    %64 = vector.load %arg10[%c0_35, %c0_36] : memref<8x1xf32, #tpu.memory_space<vmem>>, vector<8x1xf32>
    %65 = vector.broadcast %64 : vector<8x1xf32> to vector<8x512xf32>
    %66 = arith.addf %63, %65 : vector<8x512xf32>
    %67 = arith.addf %3, %66 : vector<8x512xf32>
    %c0_37 = arith.constant 0 : index
    %c0_38 = arith.constant 0 : index
    %68 = vector.load %arg13[%c0_37, %c0_38] : memref<8x512xf32, #tpu.memory_space<vmem>>, vector<8x512xf32>
    tpu.vector_store %arg13[%c0_37, %c0_38], %67 {strides = array<i32>} : memref<8x512xf32, #tpu.memory_space<vmem>>, vector<8x512xf32>,
    %c0_39 = arith.constant 0 : index
    %c0_40 = arith.constant 0 : index
    %69 = vector.load %arg11[%c0_39, %c0_40] : memref<8x128xf32, #tpu.memory_space<vmem>>, vector<8x128xf32>
    %cst_41 = arith.constant dense<0.000000e+00> : vector<8x512xf32>
    %70 = tpu.matmul %69, %61, %cst_41 {dimension_numbers = #tpu.dot_dimension_numbers<[1], [0], [0], [1], [0, 0, 1, 1], [], []>} : vector<8x128xf32>, vector<128x512xf32>, vector<8x512xf32> -> vector<8x512xf32>
    %cst_42 = arith.constant 1.000000e+00 : f32
    %71 = vector.broadcast %cst_42 : f32 to vector<8x512xf32>
    %72 = arith.addf %70, %71 : vector<8x512xf32>
    %73 = math.absf %72 : vector<8x512xf32>
    %74 = math.log %73 : vector<8x512xf32>
    %cst_43 = arith.constant dense<0.000000e+00> : vector<512xf32>
    %75 = vector.multi_reduction <add>, %74, %cst_43 [0] : vector<8x512xf32> to vector<512xf32>
    %76 = vector.shape_cast %75 : vector<512xf32> to vector<1x512xf32>
    %c0_44 = arith.constant 0 : index
    %c0_45 = arith.constant 0 : index
    %77 = vector.load %arg14[%c0_44, %c0_45] : memref<1x512xf32, #tpu.memory_space<vmem>>, vector<1x512xf32>
    tpu.vector_store %arg14[%c0_44, %c0_45], %76 {strides = array<i32>} : memref<1x512xf32, #tpu.memory_space<vmem>>, vector<1x512xf32>,
    return
  }
  func.func @transform_0(%arg0: i32) -> (i32, i32) {
    %c0_i32 = arith.constant 0 : i32
    %c0_i32_0 = arith.constant 0 : i32
    return %arg0, %c0_i32 : i32, i32
  }
  func.func @transform_1(%arg0: i32) -> (i32, i32) {
    %c0_i32 = arith.constant 0 : i32
    %c0_i32_0 = arith.constant 0 : i32
    return %arg0, %c0_i32 : i32, i32
  }
  func.func @transform_2(%arg0: i32) -> (i32, i32) {
    %c0_i32 = arith.constant 0 : i32
    %c0_i32_0 = arith.constant 0 : i32
    %c0_i32_1 = arith.constant 0 : i32
    return %c0_i32, %c0_i32_0 : i32, i32
  }
  func.func @transform_3(%arg0: i32) -> (i32, i32) {
    %c0_i32 = arith.constant 0 : i32
    %c0_i32_0 = arith.constant 0 : i32
    %c0_i32_1 = arith.constant 0 : i32
    return %c0_i32, %c0_i32_0 : i32, i32
  }
  func.func @transform_4(%arg0: i32) -> (i32, i32) {
    %c0_i32 = arith.constant 0 : i32
    %c0_i32_0 = arith.constant 0 : i32
    %c0_i32_1 = arith.constant 0 : i32
    return %c0_i32, %c0_i32_0 : i32, i32
  }
  func.func @transform_5(%arg0: i32) -> (i32, i32) {
    %c0_i32 = arith.constant 0 : i32
    %c0_i32_0 = arith.constant 0 : i32
    %c0_i32_1 = arith.constant 0 : i32
    return %c0_i32, %c0_i32_0 : i32, i32
  }
  func.func @transform_6(%arg0: i32) -> (i32, i32) {
    %c0_i32 = arith.constant 0 : i32
    %c0_i32_0 = arith.constant 0 : i32
    %c0_i32_1 = arith.constant 0 : i32
    return %c0_i32, %c0_i32_0 : i32, i32
  }
  func.func @transform_7(%arg0: i32) -> (i32, i32) {
    %c0_i32 = arith.constant 0 : i32
    %c0_i32_0 = arith.constant 0 : i32
    %c0_i32_1 = arith.constant 0 : i32
    return %c0_i32, %c0_i32_0 : i32, i32
  }
  func.func @transform_8(%arg0: i32) -> (i32, i32) {
    %c0_i32 = arith.constant 0 : i32
    %c0_i32_0 = arith.constant 0 : i32
    %c0_i32_1 = arith.constant 0 : i32
    return %c0_i32, %c0_i32_0 : i32, i32
  }
  func.func @transform_9(%arg0: i32) -> (i32, i32) {
    %c0_i32 = arith.constant 0 : i32
    %c0_i32_0 = arith.constant 0 : i32
    %c0_i32_1 = arith.constant 0 : i32
    return %c0_i32, %c0_i32_0 : i32, i32
  }
  func.func @transform_10(%arg0: i32) -> (i32, i32) {
    %c0_i32 = arith.constant 0 : i32
    %c0_i32_0 = arith.constant 0 : i32
    %c0_i32_1 = arith.constant 0 : i32
    return %c0_i32, %c0_i32_0 : i32, i32
  }
  func.func @transform_11(%arg0: i32) -> (i32, i32) {
    %c0_i32 = arith.constant 0 : i32
    %c0_i32_0 = arith.constant 0 : i32
    %c0_i32_1 = arith.constant 0 : i32
    return %c0_i32, %c0_i32_0 : i32, i32
  }
  func.func @transform_12(%arg0: i32) -> (i32, i32) {
    %c0_i32 = arith.constant 0 : i32
    %c0_i32_0 = arith.constant 0 : i32
    return %c0_i32, %arg0 : i32, i32
  }
  func.func @transform_13(%arg0: i32) -> (i32, i32) {
    %c0_i32 = arith.constant 0 : i32
    %c0_i32_0 = arith.constant 0 : i32
    return %c0_i32, %arg0 : i32, i32
  }
}

</mosaic_0001>

<llo_original>
// kernel: tpu_custom_call.1
$region0: #{tpu_custom_call.1}
  #allocation0 [shape = 'u32[]', space=smem, size = 0x4, offset = 0x4, fixed_abs, tag = 'smem constant byte address 0x4 - core index']
  #allocation1 [shape = 'u32[144,128]{1,0:T(1,128)}', space=vmem, size = 0x12000, scoped, tag = 'internal scratch']
  %s0 = inlined_call_operand.vmem [shape: f32[1024,8], index: 0, kind: input, shape index: {}]
  %s1 = inlined_call_operand.vmem [shape: bf16[1024,8], index: 1, kind: input, shape index: {}]
  %s2 = inlined_call_operand.vmem [shape: f32[24,8], index: 2, kind: input, shape index: {}]
  %s3 = inlined_call_operand.vmem [shape: f32[16,8], index: 3, kind: input, shape index: {}]
  %s4 = inlined_call_operand.vmem [shape: f32[16,1], index: 4, kind: input, shape index: {}]
  %s5 = inlined_call_operand.vmem [shape: f32[16,16], index: 5, kind: input, shape index: {}]
  %s6 = inlined_call_operand.vmem [shape: f32[16,1], index: 6, kind: input, shape index: {}]
  %s7 = inlined_call_operand.vmem [shape: f32[128,128], index: 7, kind: input, shape index: {}]
  %s8 = inlined_call_operand.vmem [shape: f32[8,16], index: 8, kind: input, shape index: {}]
  %s9 = inlined_call_operand.vmem [shape: f32[8,1], index: 9, kind: input, shape index: {}]
  %s10 = inlined_call_operand.vmem [shape: f32[8,128], index: 10, kind: input, shape index: {}]
  %s11 = inlined_call_operand.vmem [shape: f32[128,1], index: 11, kind: input, shape index: {}]
  %s12 = inlined_call_operand.hbm [shape: f32[8,1024], index: 12, kind: output, shape index: {0}]
  %s13 = inlined_call_operand.hbm [shape: f32[1,1024], index: 13, kind: output, shape index: {1}]
  %14 = xla_tuple %s12, %s13
  %s15 = sld [smem:[#allocation0]]
  $region89: #{tpu_custom_call.1} parent=0
    _
  %s17 = ssub.s32 1, %s15
  %s18 = scalar_select 0, %s17, %s15
  $region1: #{tpu_custom_call.1} parent=0
    #allocation2 [shape = 'u8[32768]{0}', space=vmem, size = 0x8000, scoped, tag = 'output window, operand 0']
    #allocation3 [shape = 's32[2]{0}', space=sflag, size = 0x8, scoped, tag = 'scoped memory for tpu_custom_call.1']
    #allocation4 [shape = 'u8[4096]{0}', space=vmem, size = 0x1000, scoped, tag = 'output window, operand 1']
    #allocation5 [shape = 's32[2]{0}', space=sflag, size = 0x8, scoped, tag = 'scoped memory for tpu_custom_call.1']
    %19 = vsyncpa [#allocation3], 0
    %s20 = scalar_lea.sflag [#allocation3], 1
    %21 = vsyncpa %s20, 0
    %22 = vsyncpa [#allocation5], 0
    %s23 = scalar_lea.sflag [#allocation5], 1
    %24 = vsyncpa %s23, 0
    loop: start=0, step=1, limit=4
    $region2: #{tpu_custom_call.1} parent=1 // loop_pre_header
      _
    $region3: #{tpu_custom_call.1} parent=1 // loop_header
      %s26 = sphi 0, %s30
      %p27 = scmp.ge.s32.totalorder %s26, 4
      %s36 = sphi 0, %s38
      %s39 = sphi 0, %s36
      %s40 = sphi 0, %s39
      %s56 = sphi 0, %s40
      %s62 = sphi 0, %s64
      %s65 = sphi 0, %s62
      %s66 = sphi 0, %s65
      %s82 = sphi 0, %s66
      %s86 = sphi 0, %s86
      %s88 = sphi 0, %s86
      %s89 = sphi 0, %s88
      %s103 = sphi 0, %s89
      %s107 = sphi 0, %s107
      %s109 = sphi 0, %s107
      %s110 = sphi 0, %s109
      %s124 = sphi 0, %s110
      %s128 = sphi 0, %s128
      %s130 = sphi 0, %s128
      %s131 = sphi 0, %s130
      %s145 = sphi 0, %s131
      %s149 = sphi 0, %s149
      %s151 = sphi 0, %s149
      %s152 = sphi 0, %s151
      %s166 = sphi 0, %s152
      %s170 = sphi 0, %s170
      %s172 = sphi 0, %s170
      %s173 = sphi 0, %s172
      %s187 = sphi 0, %s173
      %s191 = sphi 0, %s191
      %s193 = sphi 0, %s191
      %s194 = sphi 0, %s193
      %s208 = sphi 0, %s194
      %s212 = sphi 0, %s212
      %s214 = sphi 0, %s212
      %s215 = sphi 0, %s214
      %s229 = sphi 0, %s215
      %s233 = sphi 0, %s233
      %s235 = sphi 0, %s233
      %s236 = sphi 0, %s235
      %s250 = sphi 0, %s236
      %s254 = sphi 0, %s254
      %s256 = sphi 0, %s254
      %s257 = sphi 0, %s256
      %s271 = sphi 0, %s257
      %s275 = sphi 0, %s275
      %s277 = sphi 0, %s275
      %s278 = sphi 0, %s277
      %s292 = sphi 0, %s278
      %s298 = sphi 0, %s300
      %s301 = sphi 0, %s298
      %s302 = sphi 0, %s301
      %s318 = sphi 0, %s302
      %s324 = sphi 0, %s326
      %s327 = sphi 0, %s324
      %s328 = sphi 0, %s327
      %s344 = sphi 0, %s328
    $region4: #{tpu_custom_call.1} parent=1 // loop_header_branch
      %29 = sbr.rel (%p27) target = $region8
    $region5: #{tpu_custom_call.1} parent=1 // loop_body
      %s31 = ssub.s32 %s26, 1
      %s32 = ssub.s32 %s26, 2
      %s33 = sadd.s32 %s26, 1
      %s34 = ssub.s32 %s26, %s33
      %p35 = scmp.eq.s32.totalorder %s34, 0
      %s37 = sadd.s32 %s36, 1
      %s38 = scalar_select %p35, %s36, %s37
      %p41 = pneg %p35
      %p42 = scmp.eq.s32.totalorder %s26, 1
      %p43 = por %p41, %p42
      %p44 = scmp.ne.s32.totalorder %s36, %s39
      %p45 = scmp.eq.s32.totalorder %s26, 0
      %p46 = por %p44, %p45
      %p47 = scmp.ne.s32.totalorder %s36, %s39
      %p48 = scmp.eq.s32.totalorder %s31, 1
      %p49 = por %p47, %p48
      %p50 = scmp.ne.s32.totalorder %s39, %s40
      %p51 = scmp.eq.s32.totalorder %s31, 0
      %p52 = por %p50, %p51
      %p53 = scmp.ne.s32.totalorder %s39, %s40
      %p54 = scmp.eq.s32.totalorder %s32, 1
      %p55 = por %p53, %p54
      %p57 = scmp.ne.s32.totalorder %s40, %s56
      %p58 = scmp.eq.s32.totalorder %s32, 0
      %p59 = por %p57, %p58
      %s60 = ssub.s32 %s26, %s33
      %p61 = scmp.eq.s32.totalorder %s60, 0
      %s63 = sadd.s32 %s62, 1
      %s64 = scalar_select %p61, %s62, %s63
      %p67 = pneg %p61
      %p68 = scmp.eq.s32.totalorder %s26, 1
      %p69 = por %p67, %p68
      %p70 = scmp.ne.s32.totalorder %s62, %s65
      %p71 = scmp.eq.s32.totalorder %s26, 0
      %p72 = por %p70, %p71
      %p73 = scmp.ne.s32.totalorder %s62, %s65
      %p74 = scmp.eq.s32.totalorder %s31, 1
      %p75 = por %p73, %p74
      %p76 = scmp.ne.s32.totalorder %s65, %s66
      %p77 = scmp.eq.s32.totalorder %s31, 0
      %p78 = por %p76, %p77
      %p79 = scmp.ne.s32.totalorder %s65, %s66
      %p80 = scmp.eq.s32.totalorder %s32, 1
      %p81 = por %p79, %p80
      %p83 = scmp.ne.s32.totalorder %s66, %s82
      %p84 = scmp.eq.s32.totalorder %s32, 0
      %p85 = por %p83, %p84
      %s87 = sadd.s32 %s86, 1
      %p90 = scmp.eq.s32.totalorder %s26, 1
      %p91 = scmp.ne.s32.totalorder %s86, %s88
      %p92 = scmp.eq.s32.totalorder %s26, 0
      %p93 = por %p91, %p92
      %p94 = scmp.ne.s32.totalorder %s86, %s88
      %p95 = scmp.eq.s32.totalorder %s31, 1
      %p96 = por %p94, %p95
      %p97 = scmp.ne.s32.totalorder %s88, %s89
      %p98 = scmp.eq.s32.totalorder %s31, 0
      %p99 = por %p97, %p98
      %p100 = scmp.ne.s32.totalorder %s88, %s89
      %p101 = scmp.eq.s32.totalorder %s32, 1
      %p102 = por %p100, %p101
      %p104 = scmp.ne.s32.totalorder %s89, %s103
      %p105 = scmp.eq.s32.totalorder %s32, 0
      %p106 = por %p104, %p105
      %s108 = sadd.s32 %s107, 1
      %p111 = scmp.eq.s32.totalorder %s26, 1
      %p112 = scmp.ne.s32.totalorder %s107, %s109
      %p113 = scmp.eq.s32.totalorder %s26, 0
      %p114 = por %p112, %p113
      %p115 = scmp.ne.s32.totalorder %s107, %s109
      %p116 = scmp.eq.s32.totalorder %s31, 1
      %p117 = por %p115, %p116
      %p118 = scmp.ne.s32.totalorder %s109, %s110
      %p119 = scmp.eq.s32.totalorder %s31, 0
      %p120 = por %p118, %p119
      %p121 = scmp.ne.s32.totalorder %s109, %s110
      %p122 = scmp.eq.s32.totalorder %s32, 1
      %p123 = por %p121, %p122
      %p125 = scmp.ne.s32.totalorder %s110, %s124
      %p126 = scmp.eq.s32.totalorder %s32, 0
      %p127 = por %p125, %p126
      %s129 = sadd.s32 %s128, 1
      %p132 = scmp.eq.s32.totalorder %s26, 1
      %p133 = scmp.ne.s32.totalorder %s128, %s130
      %p134 = scmp.eq.s32.totalorder %s26, 0
      %p135 = por %p133, %p134
      %p136 = scmp.ne.s32.totalorder %s128, %s130
      %p137 = scmp.eq.s32.totalorder %s31, 1
      %p138 = por %p136, %p137
      %p139 = scmp.ne.s32.totalorder %s130, %s131
      %p140 = scmp.eq.s32.totalorder %s31, 0
      %p141 = por %p139, %p140
      %p142 = scmp.ne.s32.totalorder %s130, %s131
      %p143 = scmp.eq.s32.totalorder %s32, 1
      %p144 = por %p142, %p143
      %p146 = scmp.ne.s32.totalorder %s131, %s145
      %p147 = scmp.eq.s32.totalorder %s32, 0
      %p148 = por %p146, %p147
      %s150 = sadd.s32 %s149, 1
      %p153 = scmp.eq.s32.totalorder %s26, 1
      %p154 = scmp.ne.s32.totalorder %s149, %s151
      %p155 = scmp.eq.s32.totalorder %s26, 0
      %p156 = por %p154, %p155
      %p157 = scmp.ne.s32.totalorder %s149, %s151
      %p158 = scmp.eq.s32.totalorder %s31, 1
      %p159 = por %p157, %p158
      %p160 = scmp.ne.s32.totalorder %s151, %s152
      %p161 = scmp.eq.s32.totalorder %s31, 0
      %p162 = por %p160, %p161
      %p163 = scmp.ne.s32.totalorder %s151, %s152
      %p164 = scmp.eq.s32.totalorder %s32, 1
      %p165 = por %p163, %p164
      %p167 = scmp.ne.s32.totalorder %s152, %s166
      %p168 = scmp.eq.s32.totalorder %s32, 0
      %p169 = por %p167, %p168
      %s171 = sadd.s32 %s170, 1
      %p174 = scmp.eq.s32.totalorder %s26, 1
      %p175 = scmp.ne.s32.totalorder %s170, %s172
      %p176 = scmp.eq.s32.totalorder %s26, 0
      %p177 = por %p175, %p176
      %p178 = scmp.ne.s32.totalorder %s170, %s172
      %p179 = scmp.eq.s32.totalorder %s31, 1
      %p180 = por %p178, %p179
      %p181 = scmp.ne.s32.totalorder %s172, %s173
      %p182 = scmp.eq.s32.totalorder %s31, 0
      %p183 = por %p181, %p182
      %p184 = scmp.ne.s32.totalorder %s172, %s173
      %p185 = scmp.eq.s32.totalorder %s32, 1
      %p186 = por %p184, %p185
      %p188 = scmp.ne.s32.totalorder %s173, %s187
      %p189 = scmp.eq.s32.totalorder %s32, 0
      %p190 = por %p188, %p189
      %s192 = sadd.s32 %s191, 1
      %p195 = scmp.eq.s32.totalorder %s26, 1
      %p196 = scmp.ne.s32.totalorder %s191, %s193
      %p197 = scmp.eq.s32.totalorder %s26, 0
      %p198 = por %p196, %p197
      %p199 = scmp.ne.s32.totalorder %s191, %s193
      %p200 = scmp.eq.s32.totalorder %s31, 1
      %p201 = por %p199, %p200
      %p202 = scmp.ne.s32.totalorder %s193, %s194
      %p203 = scmp.eq.s32.totalorder %s31, 0
      %p204 = por %p202, %p203
      %p205 = scmp.ne.s32.totalorder %s193, %s194
      %p206 = scmp.eq.s32.totalorder %s32, 1
      %p207 = por %p205, %p206
      %p209 = scmp.ne.s32.totalorder %s194, %s208
      %p210 = scmp.eq.s32.totalorder %s32, 0
      %p211 = por %p209, %p210
      %s213 = sadd.s32 %s212, 1
      %p216 = scmp.eq.s32.totalorder %s26, 1
      %p217 = scmp.ne.s32.totalorder %s212, %s214
      %p218 = scmp.eq.s32.totalorder %s26, 0
      %p219 = por %p217, %p218
      %p220 = scmp.ne.s32.totalorder %s212, %s214
      %p221 = scmp.eq.s32.totalorder %s31, 1
      %p222 = por %p220, %p221
      %p223 = scmp.ne.s32.totalorder %s214, %s215
      %p224 = scmp.eq.s32.totalorder %s31, 0
      %p225 = por %p223, %p224
      %p226 = scmp.ne.s32.totalorder %s214, %s215
      %p227 = scmp.eq.s32.totalorder %s32, 1
      %p228 = por %p226, %p227
      %p230 = scmp.ne.s32.totalorder %s215, %s229
      %p231 = scmp.eq.s32.totalorder %s32, 0
      %p232 = por %p230, %p231
      %s234 = sadd.s32 %s233, 1
      %p237 = scmp.eq.s32.totalorder %s26, 1
      %p238 = scmp.ne.s32.totalorder %s233, %s235
      %p239 = scmp.eq.s32.totalorder %s26, 0
      %p240 = por %p238, %p239
      %p241 = scmp.ne.s32.totalorder %s233, %s235
      %p242 = scmp.eq.s32.totalorder %s31, 1
      %p243 = por %p241, %p242
      %p244 = scmp.ne.s32.totalorder %s235, %s236
      %p245 = scmp.eq.s32.totalorder %s31, 0
      %p246 = por %p244, %p245
      %p247 = scmp.ne.s32.totalorder %s235, %s236
      %p248 = scmp.eq.s32.totalorder %s32, 1
      %p249 = por %p247, %p248
      %p251 = scmp.ne.s32.totalorder %s236, %s250
      %p252 = scmp.eq.s32.totalorder %s32, 0
      %p253 = por %p251, %p252
      %s255 = sadd.s32 %s254, 1
      %p258 = scmp.eq.s32.totalorder %s26, 1
      %p259 = scmp.ne.s32.totalorder %s254, %s256
      %p260 = scmp.eq.s32.totalorder %s26, 0
      %p261 = por %p259, %p260
      %p262 = scmp.ne.s32.totalorder %s254, %s256
      %p263 = scmp.eq.s32.totalorder %s31, 1
      %p264 = por %p262, %p263
      %p265 = scmp.ne.s32.totalorder %s256, %s257
      %p266 = scmp.eq.s32.totalorder %s31, 0
      %p267 = por %p265, %p266
      %p268 = scmp.ne.s32.totalorder %s256, %s257
      %p269 = scmp.eq.s32.totalorder %s32, 1
      %p270 = por %p268, %p269
      %p272 = scmp.ne.s32.totalorder %s257, %s271
      %p273 = scmp.eq.s32.totalorder %s32, 0
      %p274 = por %p272, %p273
      %s276 = sadd.s32 %s275, 1
      %p279 = scmp.eq.s32.totalorder %s26, 1
      %p280 = scmp.ne.s32.totalorder %s275, %s277
      %p281 = scmp.eq.s32.totalorder %s26, 0
      %p282 = por %p280, %p281
      %p283 = scmp.ne.s32.totalorder %s275, %s277
      %p284 = scmp.eq.s32.totalorder %s31, 1
      %p285 = por %p283, %p284
      %p286 = scmp.ne.s32.totalorder %s277, %s278
      %p287 = scmp.eq.s32.totalorder %s31, 0
      %p288 = por %p286, %p287
      %p289 = scmp.ne.s32.totalorder %s277, %s278
      %p290 = scmp.eq.s32.totalorder %s32, 1
      %p291 = por %p289, %p290
      %p293 = scmp.ne.s32.totalorder %s278, %s292
      %p294 = scmp.eq.s32.totalorder %s32, 0
      %p295 = por %p293, %p294
      %s296 = ssub.s32 %s26, %s33
      %p297 = scmp.eq.s32.totalorder %s296, 0
      %s299 = sadd.s32 %s298, 1
      %s300 = scalar_select %p297, %s298, %s299
      %p303 = pneg %p297
      %p304 = scmp.eq.s32.totalorder %s26, 1
      %p305 = por %p303, %p304
      %p306 = scmp.ne.s32.totalorder %s298, %s301
      %p307 = scmp.eq.s32.totalorder %s26, 0
      %p308 = por %p306, %p307
      %p309 = scmp.ne.s32.totalorder %s298, %s301
      %p310 = scmp.eq.s32.totalorder %s31, 1
      %p311 = por %p309, %p310
      %p312 = scmp.ne.s32.totalorder %s301, %s302
      %p313 = scmp.eq.s32.totalorder %s31, 0
      %p314 = por %p312, %p313
      %p315 = scmp.ne.s32.totalorder %s301, %s302
      %p316 = scmp.eq.s32.totalorder %s32, 1
      %p317 = por %p315, %p316
      %p319 = scmp.ne.s32.totalorder %s302, %s318
      %p320 = scmp.eq.s32.totalorder %s32, 0
      %p321 = por %p319, %p320
      %s322 = ssub.s32 %s26, %s33
      %p323 = scmp.eq.s32.totalorder %s322, 0
      %s325 = sadd.s32 %s324, 1
      %s326 = scalar_select %p323, %s324, %s325
      %p329 = pneg %p323
      %p330 = scmp.eq.s32.totalorder %s26, 1
      %p331 = por %p329, %p330
      %p332 = scmp.ne.s32.totalorder %s324, %s327
      %p333 = scmp.eq.s32.totalorder %s26, 0
      %p334 = por %p332, %p333
      %p335 = scmp.ne.s32.totalorder %s324, %s327
      %p336 = scmp.eq.s32.totalorder %s31, 1
      %p337 = por %p335, %p336
      %p338 = scmp.ne.s32.totalorder %s327, %s328
      %p339 = scmp.eq.s32.totalorder %s31, 0
      %p340 = por %p338, %p339
      %p341 = scmp.ne.s32.totalorder %s327, %s328
      %p342 = scmp.eq.s32.totalorder %s32, 1
      %p343 = por %p341, %p342
      %p345 = scmp.ne.s32.totalorder %s328, %s344
      %p346 = scmp.eq.s32.totalorder %s32, 0
      %p347 = por %p345, %p346
      %p348 = scmp.le.s32.totalorder 1, %s26
      %p349 = scmp.lt.s32.totalorder %s26, 3
      %p350 = pnand %p348, %p349
      %p351 = pneg %p350
      // Predicated region
      $region9: #{tpu_custom_call.1} parent=5 // pred_check
        _
      $region10: #{tpu_custom_call.1} parent=5 // pred_check_branch
        %353 = sbr.rel (%p350) target = $region12
      $region11: #{tpu_custom_call.1} parent=5 // pred_region
        %s354 = ssub.s32 %s26, 1
        // Predicated region
        $region13: #{tpu_custom_call.1} parent=11 // pred_check
          %p355 = pneg %p99
        $region14: #{tpu_custom_call.1} parent=11 // pred_check_branch
          %357 = sbr.rel (%p355) target = $region16
        $region15: #{tpu_custom_call.1} parent=11 // pred_region
          _
        $region16: #{tpu_custom_call.1} parent=11 // pred_fallthru
          _
        // Predicated region
        $region17: #{tpu_custom_call.1} parent=11 // pred_check
          %p358 = pneg %p120
        $region18: #{tpu_custom_call.1} parent=11 // pred_check_branch
          %360 = sbr.rel (%p358) target = $region20
        $region19: #{tpu_custom_call.1} parent=11 // pred_region
          _
        $region20: #{tpu_custom_call.1} parent=11 // pred_fallthru
          _
        // Predicated region
        $region21: #{tpu_custom_call.1} parent=11 // pred_check
          %p361 = pneg %p141
        $region22: #{tpu_custom_call.1} parent=11 // pred_check_branch
          %363 = sbr.rel (%p361) target = $region24
        $region23: #{tpu_custom_call.1} parent=11 // pred_region
          _
        $region24: #{tpu_custom_call.1} parent=11 // pred_fallthru
          _
        // Predicated region
        $region25: #{tpu_custom_call.1} parent=11 // pred_check
          %p364 = pneg %p162
        $region26: #{tpu_custom_call.1} parent=11 // pred_check_branch
          %366 = sbr.rel (%p364) target = $region28
        $region27: #{tpu_custom_call.1} parent=11 // pred_region
          _
        $region28: #{tpu_custom_call.1} parent=11 // pred_fallthru
          _
        // Predicated region
        $region29: #{tpu_custom_call.1} parent=11 // pred_check
          %p367 = pneg %p183
        $region30: #{tpu_custom_call.1} parent=11 // pred_check_branch
          %369 = sbr.rel (%p367) target = $region32
        $region31: #{tpu_custom_call.1} parent=11 // pred_region
          _
        $region32: #{tpu_custom_call.1} parent=11 // pred_fallthru
          _
        // Predicated region
        $region33: #{tpu_custom_call.1} parent=11 // pred_check
          %p370 = pneg %p204
        $region34: #{tpu_custom_call.1} parent=11 // pred_check_branch
          %372 = sbr.rel (%p370) target = $region36
        $region35: #{tpu_custom_call.1} parent=11 // pred_region
          _
        $region36: #{tpu_custom_call.1} parent=11 // pred_fallthru
          _
        // Predicated region
        $region37: #{tpu_custom_call.1} parent=11 // pred_check
          %p373 = pneg %p225
        $region38: #{tpu_custom_call.1} parent=11 // pred_check_branch
          %375 = sbr.rel (%p373) target = $region40
        $region39: #{tpu_custom_call.1} parent=11 // pred_region
          _
        $region40: #{tpu_custom_call.1} parent=11 // pred_fallthru
          _
        // Predicated region
        $region41: #{tpu_custom_call.1} parent=11 // pred_check
          %p376 = pneg %p246
        $region42: #{tpu_custom_call.1} parent=11 // pred_check_branch
          %378 = sbr.rel (%p376) target = $region44
        $region43: #{tpu_custom_call.1} parent=11 // pred_region
          _
        $region44: #{tpu_custom_call.1} parent=11 // pred_fallthru
          _
        // Predicated region
        $region45: #{tpu_custom_call.1} parent=11 // pred_check
          %p379 = pneg %p267
        $region46: #{tpu_custom_call.1} parent=11 // pred_check_branch
          %381 = sbr.rel (%p379) target = $region48
        $region47: #{tpu_custom_call.1} parent=11 // pred_region
          _
        $region48: #{tpu_custom_call.1} parent=11 // pred_fallthru
          _
        // Predicated region
        $region49: #{tpu_custom_call.1} parent=11 // pred_check
          %p382 = pneg %p288
        $region50: #{tpu_custom_call.1} parent=11 // pred_check_branch
          %384 = sbr.rel (%p382) target = $region52
        $region51: #{tpu_custom_call.1} parent=11 // pred_region
          _
        $region52: #{tpu_custom_call.1} parent=11 // pred_fallthru
          _
      $region12: #{tpu_custom_call.1} parent=5 // pred_fallthru
        _
      %p385 = scmp.lt.s32.totalorder %s26, 2
      // Predicated region
      $region53: #{tpu_custom_call.1} parent=5 // pred_check
        %p386 = pneg %p385
      $region54: #{tpu_custom_call.1} parent=5 // pred_check_branch
        %388 = sbr.rel (%p386) target = $region56
      $region55: #{tpu_custom_call.1} parent=5 // pred_region
        // Predicated region
        $region57: #{tpu_custom_call.1} parent=55 // pred_check
          %p389 = pneg %p46
        $region58: #{tpu_custom_call.1} parent=55 // pred_check_branch
          %391 = sbr.rel (%p389) target = $region60
        $region59: #{tpu_custom_call.1} parent=55 // pred_region
          %s392 = smul.u32 64, %s26
          %p393 = scmp.lt.s32.totalorder %s392, 127
          %s394 = scalar_select %p393, %s392, 127
          %s395 = smul.addr %s394, 8
          %s396 = scalar_lea.vmem %s0, %s395
          %s397 = smul.u32 64, %s26
        $region60: #{tpu_custom_call.1} parent=55 // pred_fallthru
          _
        // Predicated region
        $region61: #{tpu_custom_call.1} parent=55 // pred_check
          %p398 = pneg %p72
        $region62: #{tpu_custom_call.1} parent=55 // pred_check_branch
          %400 = sbr.rel (%p398) target = $region64
        $region63: #{tpu_custom_call.1} parent=55 // pred_region
          %s401 = smul.u32 64, %s26
          %p402 = scmp.lt.s32.totalorder %s401, 127
          %s403 = scalar_select %p402, %s401, 127
          %s404 = smul.addr %s403, 4
          %s405 = scalar_lea.vmem %s1, %s404
          %s406 = smul.u32 64, %s26
        $region64: #{tpu_custom_call.1} parent=55 // pred_fallthru
          _
      $region56: #{tpu_custom_call.1} parent=5 // pred_fallthru
        _
      %p407 = scmp.le.s32.totalorder 1, %s26
      %p408 = scmp.lt.s32.totalorder %s26, 3
      %p409 = pnand %p407, %p408
      %p410 = pneg %p409
      // Predicated region
      $region65: #{tpu_custom_call.1} parent=5 // pred_check
        _
      $region66: #{tpu_custom_call.1} parent=5 // pred_check_branch
        %412 = sbr.rel (%p409) target = $region68
      $region67: #{tpu_custom_call.1} parent=5 // pred_region
        %s413 = ssub.s32 %s26, 1
        %s414 = smul.u32 64, %s31
        %p415 = scmp.lt.s32.totalorder %s414, 127
        %s416 = scalar_select %p415, %s414, 127
        %s417 = smul.addr %s416, 8
        %s418 = scalar_lea.vmem %s0, %s417
        %p419 = pneg %p52
        %p420 = pneg %p49
        %s421 = smul.u32 64, %s31
        %p422 = scmp.lt.s32.totalorder %s421, 127
        %s423 = scalar_select %p422, %s421, 127
        %s424 = smul.addr %s423, 4
        %s425 = scalar_lea.vmem %s1, %s424
        %p426 = pneg %p78
        %p427 = pneg %p75
        %p428 = pneg %p99
        %p429 = pneg %p96
        %p430 = pneg %p120
        %p431 = pneg %p117
        %p432 = pneg %p141
        %p433 = pneg %p138
        %p434 = pneg %p162
        %p435 = pneg %p159
        %p436 = pneg %p183
        %p437 = pneg %p180
        %p438 = pneg %p204
        %p439 = pneg %p201
        %p440 = pneg %p225
        %p441 = pneg %p222
        %p442 = pneg %p246
        %p443 = pneg %p243
        %p444 = pneg %p267
        %p445 = pneg %p264
        %p446 = pneg %p288
        %p447 = pneg %p285
        %p448 = pneg %p314
        %p449 = pneg %p311
        %s450 = sand.u32 %s301, 1
        %s451 = scalar_lea.sflag [#allocation3], %s450
        %s452 = sand.u32 %s301, 1
        %s453 = smul.addr %s452, 32
        %s454 = scalar_lea.vmem [#allocation2], %s453
        %p455 = pneg %p340
        %p456 = pneg %p337
        %s457 = sand.u32 %s327, 1
        %s458 = scalar_lea.sflag [#allocation5], %s457
        %s459 = sand.u32 %s327, 1
        %s460 = smul.addr %s459, 4
        %s461 = scalar_lea.vmem [#allocation4], %s460
        %s462 = smul.u32 64, %s31
        %p463 = scmp.lt.s32.totalorder %s462, 127
        %s464 = scalar_select %p463, %s462, 127
        %s465 = smul.addr %s464, 8
        %s466 = scalar_lea.vmem %s0, %s465
        %s467 = smul.u32 64, %s31
        %s468 = smul.u32 64, %s31
        %p469 = scmp.lt.s32.totalorder %s468, 127
        %s470 = scalar_select %p469, %s468, 127
        %s471 = smul.addr %s470, 4
        %s472 = scalar_lea.vmem %s1, %s471
        %s473 = smul.u32 64, %s31
        %s474 = smul.u32 4, %s31
        %s475 = smul.u32 4, %s31
        %v476 = vld [vmem:[%s466] sm:$0xff]
        %v477 = vld [vmem:[%s466 + $0x8] sm:$0xff]
        %v478 = vld [vmem:[%s466 + $0x10] sm:$0xff]
        %v479 = vld [vmem:[%s466 + $0x18] sm:$0xff]
        %v480 = vld [vmem:[%s466 + $0x20] sm:$0xff]
        %v481 = vld [vmem:[%s466 + $0x28] sm:$0xff]
        %v482 = vld [vmem:[%s466 + $0x30] sm:$0xff]
        %v483 = vld [vmem:[%s466 + $0x38] sm:$0xff]
        %v484 = vld [vmem:[%s466 + $0x40] sm:$0xff]
        %v485 = vld [vmem:[%s466 + $0x48] sm:$0xff]
        %v486 = vld [vmem:[%s466 + $0x50] sm:$0xff]
        %v487 = vld [vmem:[%s466 + $0x58] sm:$0xff]
        %v488 = vld [vmem:[%s466 + $0x60] sm:$0xff]
        %v489 = vld [vmem:[%s466 + $0x68] sm:$0xff]
        %v490 = vld [vmem:[%s466 + $0x70] sm:$0xff]
        %v491 = vld [vmem:[%s466 + $0x78] sm:$0xff]
        %v492 = vld [vmem:[%s466 + $0x80] sm:$0xff]
        %v493 = vld [vmem:[%s466 + $0x88] sm:$0xff]
        %v494 = vld [vmem:[%s466 + $0x90] sm:$0xff]
        %v495 = vld [vmem:[%s466 + $0x98] sm:$0xff]
        %v496 = vld [vmem:[%s466 + $0xa0] sm:$0xff]
        %v497 = vld [vmem:[%s466 + $0xa8] sm:$0xff]
        %v498 = vld [vmem:[%s466 + $0xb0] sm:$0xff]
        %v499 = vld [vmem:[%s466 + $0xb8] sm:$0xff]
        %v500 = vld [vmem:[%s466 + $0xc0] sm:$0xff]
        %v501 = vld [vmem:[%s466 + $0xc8] sm:$0xff]
        %v502 = vld [vmem:[%s466 + $0xd0] sm:$0xff]
        %v503 = vld [vmem:[%s466 + $0xd8] sm:$0xff]
        %v504 = vld [vmem:[%s466 + $0xe0] sm:$0xff]
        %v505 = vld [vmem:[%s466 + $0xe8] sm:$0xff]
        %v506 = vld [vmem:[%s466 + $0xf0] sm:$0xff]
        %v507 = vld [vmem:[%s466 + $0xf8] sm:$0xff]
        %v508 = vld [vmem:[%s466 + $0x100] sm:$0xff]
        %v509 = vld [vmem:[%s466 + $0x108] sm:$0xff]
        %v510 = vld [vmem:[%s466 + $0x110] sm:$0xff]
        %v511 = vld [vmem:[%s466 + $0x118] sm:$0xff]
        %v512 = vld [vmem:[%s466 + $0x120] sm:$0xff]
        %v513 = vld [vmem:[%s466 + $0x128] sm:$0xff]
        %v514 = vld [vmem:[%s466 + $0x130] sm:$0xff]
        %v515 = vld [vmem:[%s466 + $0x138] sm:$0xff]
        %v516 = vld [vmem:[%s466 + $0x140] sm:$0xff]
        %v517 = vld [vmem:[%s466 + $0x148] sm:$0xff]
        %v518 = vld [vmem:[%s466 + $0x150] sm:$0xff]
        %v519 = vld [vmem:[%s466 + $0x158] sm:$0xff]
        %v520 = vld [vmem:[%s466 + $0x160] sm:$0xff]
        %v521 = vld [vmem:[%s466 + $0x168] sm:$0xff]
        %v522 = vld [vmem:[%s466 + $0x170] sm:$0xff]
        %v523 = vld [vmem:[%s466 + $0x178] sm:$0xff]
        %v524 = vld [vmem:[%s466 + $0x180] sm:$0xff]
        %v525 = vld [vmem:[%s466 + $0x188] sm:$0xff]
        %v526 = vld [vmem:[%s466 + $0x190] sm:$0xff]
        %v527 = vld [vmem:[%s466 + $0x198] sm:$0xff]
        %v528 = vld [vmem:[%s466 + $0x1a0] sm:$0xff]
        %v529 = vld [vmem:[%s466 + $0x1a8] sm:$0xff]
        %v530 = vld [vmem:[%s466 + $0x1b0] sm:$0xff]
        %v531 = vld [vmem:[%s466 + $0x1b8] sm:$0xff]
        %v532 = vld [vmem:[%s466 + $0x1c0] sm:$0xff]
        %v533 = vld [vmem:[%s466 + $0x1c8] sm:$0xff]
        %v534 = vld [vmem:[%s466 + $0x1d0] sm:$0xff]
        %v535 = vld [vmem:[%s466 + $0x1d8] sm:$0xff]
        %v536 = vld [vmem:[%s466 + $0x1e0] sm:$0xff]
        %v537 = vld [vmem:[%s466 + $0x1e8] sm:$0xff]
        %v538 = vld [vmem:[%s466 + $0x1f0] sm:$0xff]
        %v539 = vld [vmem:[%s466 + $0x1f8] sm:$0xff]
        %v540 = vld [vmem:[%s2] sm:$0xff]
        %v541 = vld [vmem:[%s2 + $0x8] sm:$0xff]
        %v542 = vld [vmem:[%s2 + $0x10] sm:$0xff]
        %vm543 = vcmask 64512
        %v545 = vsel %vm543, %v540, 0
        %v548 = vsel %vm543, %v541, 0
        %v551 = vsel %vm543, %v542, 0
        %v554 = vsel %vm543, %v476, 0
        %v557 = vsel %vm543, %v477, 0
        %v560 = vsel %vm543, %v478, 0
        %v563 = vsel %vm543, %v479, 0
        %v566 = vsel %vm543, %v480, 0
        %v569 = vsel %vm543, %v481, 0
        %v572 = vsel %vm543, %v482, 0
        %v575 = vsel %vm543, %v483, 0
        %v578 = vsel %vm543, %v484, 0
        %v581 = vsel %vm543, %v485, 0
        %v584 = vsel %vm543, %v486, 0
        %v587 = vsel %vm543, %v487, 0
        %v590 = vsel %vm543, %v488, 0
        %v593 = vsel %vm543, %v489, 0
        %v596 = vsel %vm543, %v490, 0
        %v599 = vsel %vm543, %v491, 0
        %v602 = vsel %vm543, %v492, 0
        %v605 = vsel %vm543, %v493, 0
        %v608 = vsel %vm543, %v494, 0
        %v611 = vsel %vm543, %v495, 0
        %v614 = vsel %vm543, %v496, 0
        %v617 = vsel %vm543, %v497, 0
        %v620 = vsel %vm543, %v498, 0
        %v623 = vsel %vm543, %v499, 0
        %v626 = vsel %vm543, %v500, 0
        %v629 = vsel %vm543, %v501, 0
        %v632 = vsel %vm543, %v502, 0
        %v635 = vsel %vm543, %v503, 0
        %v638 = vsel %vm543, %v504, 0
        %v641 = vsel %vm543, %v505, 0
        %v644 = vsel %vm543, %v506, 0
        %v647 = vsel %vm543, %v507, 0
        %v650 = vsel %vm543, %v508, 0
        %v653 = vsel %vm543, %v509, 0
        %v656 = vsel %vm543, %v510, 0
        %v659 = vsel %vm543, %v511, 0
        %v662 = vsel %vm543, %v512, 0
        %v665 = vsel %vm543, %v513, 0
        %v668 = vsel %vm543, %v514, 0
        %v671 = vsel %vm543, %v515, 0
        %v674 = vsel %vm543, %v516, 0
        %v677 = vsel %vm543, %v517, 0
        %v680 = vsel %vm543, %v518, 0
        %v683 = vsel %vm543, %v519, 0
        %v686 = vsel %vm543, %v520, 0
        %v689 = vsel %vm543, %v521, 0
        %v692 = vsel %vm543, %v522, 0
        %v695 = vsel %vm543, %v523, 0
        %v698 = vsel %vm543, %v524, 0
        %v701 = vsel %vm543, %v525, 0
        %v704 = vsel %vm543, %v526, 0
        %v707 = vsel %vm543, %v527, 0
        %v710 = vsel %vm543, %v528, 0
        %v713 = vsel %vm543, %v529, 0
        %v716 = vsel %vm543, %v530, 0
        %v719 = vsel %vm543, %v531, 0
        %v722 = vsel %vm543, %v532, 0
        %v725 = vsel %vm543, %v533, 0
        %v728 = vsel %vm543, %v534, 0
        %v731 = vsel %vm543, %v535, 0
        %v734 = vsel %vm543, %v536, 0
        %v737 = vsel %vm543, %v537, 0
        %v740 = vsel %vm543, %v538, 0
        %v743 = vsel %vm543, %v539, 0
        %745 = vmatprep.subr.mxu0 0.0
        %746 = vmatpush1.xpose.msra.mxu0 %v554
        %747 = vmatprep.subr.mxu0 0.0
        %748 = vmatpush1.xpose.msra.mxu0 %v557
        %749 = vmatprep.subr.mxu0 0.0
        %750 = vmatpush1.xpose.msra.mxu0 %v560
        %751 = vmatprep.subr.mxu0 0.0
        %752 = vmatpush1.xpose.msra.mxu0 %v563
        %753 = vmatprep.subr.mxu0 0.0
        %754 = vmatpush1.xpose.msra.mxu0 %v566
        %755 = vmatprep.subr.mxu0 0.0
        %756 = vmatpush1.xpose.msra.mxu0 %v569
        %757 = vmatprep.subr.mxu0 0.0
        %758 = vmatpush1.xpose.msra.mxu0 %v572
        %759 = vmatprep.subr.mxu0 0.0
        %760 = vmatpush1.xpose.msra.mxu0 %v575
        %761 = vmatprep.subr.mxu0 0.0
        %762 = vmatpush1.xpose.msra.mxu0 %v578
        %763 = vmatprep.subr.mxu0 0.0
        %764 = vmatpush1.xpose.msra.mxu0 %v581
        %765 = vmatprep.subr.mxu0 0.0
        %766 = vmatpush1.xpose.msra.mxu0 %v584
        %767 = vmatprep.subr.mxu0 0.0
        %768 = vmatpush1.xpose.msra.mxu0 %v587
        %769 = vmatprep.subr.mxu0 0.0
        %770 = vmatpush1.xpose.msra.mxu0 %v590
        %771 = vmatprep.subr.mxu0 0.0
        %772 = vmatpush1.xpose.msra.mxu0 %v593
        %773 = vmatprep.subr.mxu0 0.0
        %774 = vmatpush1.xpose.msra.mxu0 %v596
        %775 = vmatprep.subr.mxu0 0.0
        %776 = vmatpush1.xpose.msra.mxu0 %v599
        %777 = vmatprep.subr.mxu0 0.0
        %778 = vmatpush1.xpose.msra.mxu0 %v602
        %779 = vmatprep.subr.mxu0 0.0
        %780 = vmatpush1.xpose.msra.mxu0 %v605
        %781 = vmatprep.subr.mxu0 0.0
        %782 = vmatpush1.xpose.msra.mxu0 %v608
        %783 = vmatprep.subr.mxu0 0.0
        %784 = vmatpush1.xpose.msra.mxu0 %v611
        %785 = vmatprep.subr.mxu0 0.0
        %786 = vmatpush1.xpose.msra.mxu0 %v614
        %787 = vmatprep.subr.mxu0 0.0
        %788 = vmatpush1.xpose.msra.mxu0 %v617
        %789 = vmatprep.subr.mxu0 0.0
        %790 = vmatpush1.xpose.msra.mxu0 %v620
        %791 = vmatprep.subr.mxu0 0.0
        %792 = vmatpush1.xpose.msra.mxu0 %v623
        %793 = vmatprep.subr.mxu0 0.0
        %794 = vmatpush1.xpose.msra.mxu0 %v626
        %795 = vmatprep.subr.mxu0 0.0
        %796 = vmatpush1.xpose.msra.mxu0 %v629
        %797 = vmatprep.subr.mxu0 0.0
        %798 = vmatpush1.xpose.msra.mxu0 %v632
        %799 = vmatprep.subr.mxu0 0.0
        %800 = vmatpush1.xpose.msra.mxu0 %v635
        %801 = vmatprep.subr.mxu0 0.0
        %802 = vmatpush1.xpose.msra.mxu0 %v638
        %803 = vmatprep.subr.mxu0 0.0
        %804 = vmatpush1.xpose.msra.mxu0 %v641
        %805 = vmatprep.subr.mxu0 0.0
        %806 = vmatpush1.xpose.msra.mxu0 %v644
        %807 = vmatprep.subr.mxu0 0.0
        %808 = vmatpush1.xpose.msra.mxu0 %v647
        %809 = vmatprep.mubr.f32.mxu0 0.0
        %810 = vmatmul.mubr.f32.gmra.mrb[0].mxu0 %v545
        %v811 = vpop.f32.mrb[0].mxu0
        %v812 = vadd.f32 0.0, %v811
        %v813 = vpop.f32.mrb[0].mxu0
        %v814 = vadd.f32 0.0, %v813
        %815 = vmatprep.mubr.f32.mxu0 0.0
        %816 = vmatmul.mubr.f32.gmra.mrb[0].mxu0 %v548
        %v817 = vpop.f32.mrb[0].mxu0
        %v818 = vadd.f32 0.0, %v817
        %v819 = vpop.f32.mrb[0].mxu0
        %v820 = vadd.f32 0.0, %v819
        %821 = vmatprep.mubr.f32.mxu0 0.0
        %822 = vmatmul.mubr.f32.gmra.mrb[0].mxu0 %v551
        %v823 = vpop.f32.mrb[0].mxu0
        %v824 = vadd.f32 0.0, %v823
        %v825 = vpop.f32.mrb[0].mxu0
        %v826 = vadd.f32 0.0, %v825
        %827 = vdwg.mxu0
        %828 = vmatprep.subr.mxu0 0.0
        %829 = vmatpush1.xpose.msra.mxu0 %v650
        %830 = vmatprep.subr.mxu0 0.0
        %831 = vmatpush1.xpose.msra.mxu0 %v653
        %832 = vmatprep.subr.mxu0 0.0
        %833 = vmatpush1.xpose.msra.mxu0 %v656
        %834 = vmatprep.subr.mxu0 0.0
        %835 = vmatpush1.xpose.msra.mxu0 %v659
        %836 = vmatprep.subr.mxu0 0.0
        %837 = vmatpush1.xpose.msra.mxu0 %v662
        %838 = vmatprep.subr.mxu0 0.0
        %839 = vmatpush1.xpose.msra.mxu0 %v665
        %840 = vmatprep.subr.mxu0 0.0
        %841 = vmatpush1.xpose.msra.mxu0 %v668
        %842 = vmatprep.subr.mxu0 0.0
        %843 = vmatpush1.xpose.msra.mxu0 %v671
        %844 = vmatprep.subr.mxu0 0.0
        %845 = vmatpush1.xpose.msra.mxu0 %v674
        %846 = vmatprep.subr.mxu0 0.0
        %847 = vmatpush1.xpose.msra.mxu0 %v677
        %848 = vmatprep.subr.mxu0 0.0
        %849 = vmatpush1.xpose.msra.mxu0 %v680
        %850 = vmatprep.subr.mxu0 0.0
        %851 = vmatpush1.xpose.msra.mxu0 %v683
        %852 = vmatprep.subr.mxu0 0.0
        %853 = vmatpush1.xpose.msra.mxu0 %v686
        %854 = vmatprep.subr.mxu0 0.0
        %855 = vmatpush1.xpose.msra.mxu0 %v689
        %856 = vmatprep.subr.mxu0 0.0
        %857 = vmatpush1.xpose.msra.mxu0 %v692
        %858 = vmatprep.subr.mxu0 0.0
        %859 = vmatpush1.xpose.msra.mxu0 %v695
        %860 = vmatprep.subr.mxu0 0.0
        %861 = vmatpush1.xpose.msra.mxu0 %v698
        %862 = vmatprep.subr.mxu0 0.0
        %863 = vmatpush1.xpose.msra.mxu0 %v701
        %864 = vmatprep.subr.mxu0 0.0
        %865 = vmatpush1.xpose.msra.mxu0 %v704
        %866 = vmatprep.subr.mxu0 0.0
        %867 = vmatpush1.xpose.msra.mxu0 %v707
        %868 = vmatprep.subr.mxu0 0.0
        %869 = vmatpush1.xpose.msra.mxu0 %v710
        %870 = vmatprep.subr.mxu0 0.0
        %871 = vmatpush1.xpose.msra.mxu0 %v713
        %872 = vmatprep.subr.mxu0 0.0
        %873 = vmatpush1.xpose.msra.mxu0 %v716
        %874 = vmatprep.subr.mxu0 0.0
        %875 = vmatpush1.xpose.msra.mxu0 %v719
        %876 = vmatprep.subr.mxu0 0.0
        %877 = vmatpush1.xpose.msra.mxu0 %v722
        %878 = vmatprep.subr.mxu0 0.0
        %879 = vmatpush1.xpose.msra.mxu0 %v725
        %880 = vmatprep.subr.mxu0 0.0
        %881 = vmatpush1.xpose.msra.mxu0 %v728
        %882 = vmatprep.subr.mxu0 0.0
        %883 = vmatpush1.xpose.msra.mxu0 %v731
        %884 = vmatprep.subr.mxu0 0.0
        %885 = vmatpush1.xpose.msra.mxu0 %v734
        %886 = vmatprep.subr.mxu0 0.0
        %887 = vmatpush1.xpose.msra.mxu0 %v737
        %888 = vmatprep.subr.mxu0 0.0
        %889 = vmatpush1.xpose.msra.mxu0 %v740
        %890 = vmatprep.subr.mxu0 0.0
        %891 = vmatpush1.xpose.msra.mxu0 %v743
        %892 = vmatprep.mubr.f32.mxu0 0.0
        %893 = vmatmul.mubr.f32.gmra.mrb[0].mxu0 %v545
        %v894 = vpop.f32.mrb[0].mxu0
        %v895 = vadd.f32 0.0, %v894
        %v896 = vpop.f32.mrb[0].mxu0
        %v897 = vadd.f32 0.0, %v896
        %898 = vmatprep.mubr.f32.mxu0 0.0
        %899 = vmatmul.mubr.f32.gmra.mrb[0].mxu0 %v548
        %v900 = vpop.f32.mrb[0].mxu0
        %v901 = vadd.f32 0.0, %v900
        %v902 = vpop.f32.mrb[0].mxu0
        %v903 = vadd.f32 0.0, %v902
        %904 = vmatprep.mubr.f32.mxu0 0.0
        %905 = vmatmul.mubr.f32.gmra.mrb[0].mxu0 %v551
        %v906 = vpop.f32.mrb[0].mxu0
        %v907 = vadd.f32 0.0, %v906
        %v908 = vpop.f32.mrb[0].mxu0
        %v909 = vadd.f32 0.0, %v908
        %910 = vdwg.mxu0
        %v911 = vld [vmem:[%s4] sm:$0xff]
        %v912 = vld [vmem:[%s4 + $0x8] sm:$0xff]
        %914 = vset.pattern.permute.xlu0 0
        %915 = vperm.xlu0 %914, %v911
        %v916 = vpop.permute.xlu0 %915
        %919 = vset.pattern.permute.xlu0 0
        %920 = vperm.xlu0 %919, %v912
        %v921 = vpop.permute.xlu0 %920
        %v923 = vadd.f32 %v818, %v916
        %v924 = vadd.f32 %v820, %v916
        %v925 = vadd.f32 %v901, %v916
        %v926 = vadd.f32 %v903, %v916
        %v927 = vadd.f32 %v824, %v921
        %v928 = vadd.f32 %v826, %v921
        %v929 = vadd.f32 %v907, %v921
        %v930 = vadd.f32 %v909, %v921
        %v931 = vld [vmem:[%s472] sm:$0xf]
        %v932 = vld [vmem:[%s472 + $0x4] sm:$0xf]
        %v933 = vld [vmem:[%s472 + $0x8] sm:$0xf]
        %v934 = vld [vmem:[%s472 + $0xc] sm:$0xf]
        %v935 = vld [vmem:[%s472 + $0x10] sm:$0xf]
        %v936 = vld [vmem:[%s472 + $0x14] sm:$0xf]
        %v937 = vld [vmem:[%s472 + $0x18] sm:$0xf]
        %v938 = vld [vmem:[%s472 + $0x1c] sm:$0xf]
        %v939 = vld [vmem:[%s472 + $0x20] sm:$0xf]
        %v940 = vld [vmem:[%s472 + $0x24] sm:$0xf]
        %v941 = vld [vmem:[%s472 + $0x28] sm:$0xf]
        %v942 = vld [vmem:[%s472 + $0x2c] sm:$0xf]
        %v943 = vld [vmem:[%s472 + $0x30] sm:$0xf]
        %v944 = vld [vmem:[%s472 + $0x34] sm:$0xf]
        %v945 = vld [vmem:[%s472 + $0x38] sm:$0xf]
        %v946 = vld [vmem:[%s472 + $0x3c] sm:$0xf]
        %v947 = vld [vmem:[%s472 + $0x40] sm:$0xf]
        %v948 = vld [vmem:[%s472 + $0x44] sm:$0xf]
        %v949 = vld [vmem:[%s472 + $0x48] sm:$0xf]
        %v950 = vld [vmem:[%s472 + $0x4c] sm:$0xf]
        %v951 = vld [vmem:[%s472 + $0x50] sm:$0xf]
        %v952 = vld [vmem:[%s472 + $0x54] sm:$0xf]
        %v953 = vld [vmem:[%s472 + $0x58] sm:$0xf]
        %v954 = vld [vmem:[%s472 + $0x5c] sm:$0xf]
        %v955 = vld [vmem:[%s472 + $0x60] sm:$0xf]
        %v956 = vld [vmem:[%s472 + $0x64] sm:$0xf]
        %v957 = vld [vmem:[%s472 + $0x68] sm:$0xf]
        %v958 = vld [vmem:[%s472 + $0x6c] sm:$0xf]
        %v959 = vld [vmem:[%s472 + $0x70] sm:$0xf]
        %v960 = vld [vmem:[%s472 + $0x74] sm:$0xf]
        %v961 = vld [vmem:[%s472 + $0x78] sm:$0xf]
        %v962 = vld [vmem:[%s472 + $0x7c] sm:$0xf]
        %v963 = vld [vmem:[%s472 + $0x80] sm:$0xf]
        %v964 = vld [vmem:[%s472 + $0x84] sm:$0xf]
        %v965 = vld [vmem:[%s472 + $0x88] sm:$0xf]
        %v966 = vld [vmem:[%s472 + $0x8c] sm:$0xf]
        %v967 = vld [vmem:[%s472 + $0x90] sm:$0xf]
        %v968 = vld [vmem:[%s472 + $0x94] sm:$0xf]
        %v969 = vld [vmem:[%s472 + $0x98] sm:$0xf]
        %v970 = vld [vmem:[%s472 + $0x9c] sm:$0xf]
        %v971 = vld [vmem:[%s472 + $0xa0] sm:$0xf]
        %v972 = vld [vmem:[%s472 + $0xa4] sm:$0xf]
        %v973 = vld [vmem:[%s472 + $0xa8] sm:$0xf]
        %v974 = vld [vmem:[%s472 + $0xac] sm:$0xf]
        %v975 = vld [vmem:[%s472 + $0xb0] sm:$0xf]
        %v976 = vld [vmem:[%s472 + $0xb4] sm:$0xf]
        %v977 = vld [vmem:[%s472 + $0xb8] sm:$0xf]
        %v978 = vld [vmem:[%s472 + $0xbc] sm:$0xf]
        %v979 = vld [vmem:[%s472 + $0xc0] sm:$0xf]
        %v980 = vld [vmem:[%s472 + $0xc4] sm:$0xf]
        %v981 = vld [vmem:[%s472 + $0xc8] sm:$0xf]
        %v982 = vld [vmem:[%s472 + $0xcc] sm:$0xf]
        %v983 = vld [vmem:[%s472 + $0xd0] sm:$0xf]
        %v984 = vld [vmem:[%s472 + $0xd4] sm:$0xf]
        %v985 = vld [vmem:[%s472 + $0xd8] sm:$0xf]
        %v986 = vld [vmem:[%s472 + $0xdc] sm:$0xf]
        %v987 = vld [vmem:[%s472 + $0xe0] sm:$0xf]
        %v988 = vld [vmem:[%s472 + $0xe4] sm:$0xf]
        %v989 = vld [vmem:[%s472 + $0xe8] sm:$0xf]
        %v990 = vld [vmem:[%s472 + $0xec] sm:$0xf]
        %v991 = vld [vmem:[%s472 + $0xf0] sm:$0xf]
        %v992 = vld [vmem:[%s472 + $0xf4] sm:$0xf]
        %v993 = vld [vmem:[%s472 + $0xf8] sm:$0xf]
        %v994 = vld [vmem:[%s472 + $0xfc] sm:$0xf]
        %v995 = vunpack.c.l.bf16 %v931
        %v996 = vunpack.c.l.bf16 %v932
        %v997 = vunpack.c.l.bf16 %v933
        %v998 = vunpack.c.l.bf16 %v934
        %v999 = vunpack.c.l.bf16 %v935
        %v1000 = vunpack.c.l.bf16 %v936
        %v1001 = vunpack.c.l.bf16 %v937
        %v1002 = vunpack.c.l.bf16 %v938
        %v1003 = vunpack.c.l.bf16 %v939
        %v1004 = vunpack.c.l.bf16 %v940
        %v1005 = vunpack.c.l.bf16 %v941
        %v1006 = vunpack.c.l.bf16 %v942
        %v1007 = vunpack.c.l.bf16 %v943
        %v1008 = vunpack.c.l.bf16 %v944
        %v1009 = vunpack.c.l.bf16 %v945
        %v1010 = vunpack.c.l.bf16 %v946
        %v1011 = vunpack.c.l.bf16 %v947
        %v1012 = vunpack.c.l.bf16 %v948
        %v1013 = vunpack.c.l.bf16 %v949
        %v1014 = vunpack.c.l.bf16 %v950
        %v1015 = vunpack.c.l.bf16 %v951
        %v1016 = vunpack.c.l.bf16 %v952
        %v1017 = vunpack.c.l.bf16 %v953
        %v1018 = vunpack.c.l.bf16 %v954
        %v1019 = vunpack.c.l.bf16 %v955
        %v1020 = vunpack.c.l.bf16 %v956
        %v1021 = vunpack.c.l.bf16 %v957
        %v1022 = vunpack.c.l.bf16 %v958
        %v1023 = vunpack.c.l.bf16 %v959
        %v1024 = vunpack.c.l.bf16 %v960
        %v1025 = vunpack.c.l.bf16 %v961
        %v1026 = vunpack.c.l.bf16 %v962
        %v1027 = vunpack.c.l.bf16 %v963
        %v1028 = vunpack.c.l.bf16 %v964
        %v1029 = vunpack.c.l.bf16 %v965
        %v1030 = vunpack.c.l.bf16 %v966
        %v1031 = vunpack.c.l.bf16 %v967
        %v1032 = vunpack.c.l.bf16 %v968
        %v1033 = vunpack.c.l.bf16 %v969
        %v1034 = vunpack.c.l.bf16 %v970
        %v1035 = vunpack.c.l.bf16 %v971
        %v1036 = vunpack.c.l.bf16 %v972
        %v1037 = vunpack.c.l.bf16 %v973
        %v1038 = vunpack.c.l.bf16 %v974
        %v1039 = vunpack.c.l.bf16 %v975
        %v1040 = vunpack.c.l.bf16 %v976
        %v1041 = vunpack.c.l.bf16 %v977
        %v1042 = vunpack.c.l.bf16 %v978
        %v1043 = vunpack.c.l.bf16 %v979
        %v1044 = vunpack.c.l.bf16 %v980
        %v1045 = vunpack.c.l.bf16 %v981
        %v1046 = vunpack.c.l.bf16 %v982
        %v1047 = vunpack.c.l.bf16 %v983
        %v1048 = vunpack.c.l.bf16 %v984
        %v1049 = vunpack.c.l.bf16 %v985
        %v1050 = vunpack.c.l.bf16 %v986
        %v1051 = vunpack.c.l.bf16 %v987
        %v1052 = vunpack.c.l.bf16 %v988
        %v1053 = vunpack.c.l.bf16 %v989
        %v1054 = vunpack.c.l.bf16 %v990
        %v1055 = vunpack.c.l.bf16 %v991
        %v1056 = vunpack.c.l.bf16 %v992
        %v1057 = vunpack.c.l.bf16 %v993
        %v1058 = vunpack.c.l.bf16 %v994
        %v1059 = vld [vmem:[%s3] sm:$0xff]
        %v1060 = vld [vmem:[%s3 + $0x8] sm:$0xff]
        %v1062 = vsel %vm543, %v1059, 0
        %v1065 = vsel %vm543, %v1060, 0
        %v1068 = vsel %vm543, %v995, 0
        %v1071 = vsel %vm543, %v996, 0
        %v1074 = vsel %vm543, %v997, 0
        %v1077 = vsel %vm543, %v998, 0
        %v1080 = vsel %vm543, %v999, 0
        %v1083 = vsel %vm543, %v1000, 0
        %v1086 = vsel %vm543, %v1001, 0
        %v1089 = vsel %vm543, %v1002, 0
        %v1092 = vsel %vm543, %v1003, 0
        %v1095 = vsel %vm543, %v1004, 0
        %v1098 = vsel %vm543, %v1005, 0
        %v1101 = vsel %vm543, %v1006, 0
        %v1104 = vsel %vm543, %v1007, 0
        %v1107 = vsel %vm543, %v1008, 0
        %v1110 = vsel %vm543, %v1009, 0
        %v1113 = vsel %vm543, %v1010, 0
        %v1116 = vsel %vm543, %v1011, 0
        %v1119 = vsel %vm543, %v1012, 0
        %v1122 = vsel %vm543, %v1013, 0
        %v1125 = vsel %vm543, %v1014, 0
        %v1128 = vsel %vm543, %v1015, 0
        %v1131 = vsel %vm543, %v1016, 0
        %v1134 = vsel %vm543, %v1017, 0
        %v1137 = vsel %vm543, %v1018, 0
        %v1140 = vsel %vm543, %v1019, 0
        %v1143 = vsel %vm543, %v1020, 0
        %v1146 = vsel %vm543, %v1021, 0
        %v1149 = vsel %vm543, %v1022, 0
        %v1152 = vsel %vm543, %v1023, 0
        %v1155 = vsel %vm543, %v1024, 0
        %v1158 = vsel %vm543, %v1025, 0
        %v1161 = vsel %vm543, %v1026, 0
        %v1164 = vsel %vm543, %v1027, 0
        %v1167 = vsel %vm543, %v1028, 0
        %v1170 = vsel %vm543, %v1029, 0
        %v1173 = vsel %vm543, %v1030, 0
        %v1176 = vsel %vm543, %v1031, 0
        %v1179 = vsel %vm543, %v1032, 0
        %v1182 = vsel %vm543, %v1033, 0
        %v1185 = vsel %vm543, %v1034, 0
        %v1188 = vsel %vm543, %v1035, 0
        %v1191 = vsel %vm543, %v1036, 0
        %v1194 = vsel %vm543, %v1037, 0
        %v1197 = vsel %vm543, %v1038, 0
        %v1200 = vsel %vm543, %v1039, 0
        %v1203 = vsel %vm543, %v1040, 0
        %v1206 = vsel %vm543, %v1041, 0
        %v1209 = vsel %vm543, %v1042, 0
        %v1212 = vsel %vm543, %v1043, 0
        %v1215 = vsel %vm543, %v1044, 0
        %v1218 = vsel %vm543, %v1045, 0
        %v1221 = vsel %vm543, %v1046, 0
        %v1224 = vsel %vm543, %v1047, 0
        %v1227 = vsel %vm543, %v1048, 0
        %v1230 = vsel %vm543, %v1049, 0
        %v1233 = vsel %vm543, %v1050, 0
        %v1236 = vsel %vm543, %v1051, 0
        %v1239 = vsel %vm543, %v1052, 0
        %v1242 = vsel %vm543, %v1053, 0
        %v1245 = vsel %vm543, %v1054, 0
        %v1248 = vsel %vm543, %v1055, 0
        %v1251 = vsel %vm543, %v1056, 0
        %v1254 = vsel %vm543, %v1057, 0
        %v1257 = vsel %vm543, %v1058, 0
        %1259 = vmatprep.subr.mxu0 0.0
        %1260 = vmatpush1.xpose.msra.mxu0 %v1068
        %1261 = vmatprep.subr.mxu0 0.0
        %1262 = vmatpush1.xpose.msra.mxu0 %v1071
        %1263 = vmatprep.subr.mxu0 0.0
        %1264 = vmatpush1.xpose.msra.mxu0 %v1074
        %1265 = vmatprep.subr.mxu0 0.0
        %1266 = vmatpush1.xpose.msra.mxu0 %v1077
        %1267 = vmatprep.subr.mxu0 0.0
        %1268 = vmatpush1.xpose.msra.mxu0 %v1080
        %1269 = vmatprep.subr.mxu0 0.0
        %1270 = vmatpush1.xpose.msra.mxu0 %v1083
        %1271 = vmatprep.subr.mxu0 0.0
        %1272 = vmatpush1.xpose.msra.mxu0 %v1086
        %1273 = vmatprep.subr.mxu0 0.0
        %1274 = vmatpush1.xpose.msra.mxu0 %v1089
        %1275 = vmatprep.subr.mxu0 0.0
        %1276 = vmatpush1.xpose.msra.mxu0 %v1092
        %1277 = vmatprep.subr.mxu0 0.0
        %1278 = vmatpush1.xpose.msra.mxu0 %v1095
        %1279 = vmatprep.subr.mxu0 0.0
        %1280 = vmatpush1.xpose.msra.mxu0 %v1098
        %1281 = vmatprep.subr.mxu0 0.0
        %1282 = vmatpush1.xpose.msra.mxu0 %v1101
        %1283 = vmatprep.subr.mxu0 0.0
        %1284 = vmatpush1.xpose.msra.mxu0 %v1104
        %1285 = vmatprep.subr.mxu0 0.0
        %1286 = vmatpush1.xpose.msra.mxu0 %v1107
        %1287 = vmatprep.subr.mxu0 0.0
        %1288 = vmatpush1.xpose.msra.mxu0 %v1110
        %1289 = vmatprep.subr.mxu0 0.0
        %1290 = vmatpush1.xpose.msra.mxu0 %v1113
        %1291 = vmatprep.subr.mxu0 0.0
        %1292 = vmatpush1.xpose.msra.mxu0 %v1116
        %1293 = vmatprep.subr.mxu0 0.0
        %1294 = vmatpush1.xpose.msra.mxu0 %v1119
        %1295 = vmatprep.subr.mxu0 0.0
        %1296 = vmatpush1.xpose.msra.mxu0 %v1122
        %1297 = vmatprep.subr.mxu0 0.0
        %1298 = vmatpush1.xpose.msra.mxu0 %v1125
        %1299 = vmatprep.subr.mxu0 0.0
        %1300 = vmatpush1.xpose.msra.mxu0 %v1128
        %1301 = vmatprep.subr.mxu0 0.0
        %1302 = vmatpush1.xpose.msra.mxu0 %v1131
        %1303 = vmatprep.subr.mxu0 0.0
        %1304 = vmatpush1.xpose.msra.mxu0 %v1134
        %1305 = vmatprep.subr.mxu0 0.0
        %1306 = vmatpush1.xpose.msra.mxu0 %v1137
        %1307 = vmatprep.subr.mxu0 0.0
        %1308 = vmatpush1.xpose.msra.mxu0 %v1140
        %1309 = vmatprep.subr.mxu0 0.0
        %1310 = vmatpush1.xpose.msra.mxu0 %v1143
        %1311 = vmatprep.subr.mxu0 0.0
        %1312 = vmatpush1.xpose.msra.mxu0 %v1146
        %1313 = vmatprep.subr.mxu0 0.0
        %1314 = vmatpush1.xpose.msra.mxu0 %v1149
        %1315 = vmatprep.subr.mxu0 0.0
        %1316 = vmatpush1.xpose.msra.mxu0 %v1152
        %1317 = vmatprep.subr.mxu0 0.0
        %1318 = vmatpush1.xpose.msra.mxu0 %v1155
        %1319 = vmatprep.subr.mxu0 0.0
        %1320 = vmatpush1.xpose.msra.mxu0 %v1158
        %1321 = vmatprep.subr.mxu0 0.0
        %1322 = vmatpush1.xpose.msra.mxu0 %v1161
        %1323 = vmatprep.mubr.f32.mxu0 0.0
        %1324 = vmatmul.mubr.f32.gmra.mrb[0].mxu0 %v1062
        %v1325 = vpop.f32.mrb[0].mxu0
        %v1326 = vadd.f32 0.0, %v1325
        %v1327 = vpop.f32.mrb[0].mxu0
        %v1328 = vadd.f32 0.0, %v1327
        %1329 = vmatprep.mubr.f32.mxu0 0.0
        %1330 = vmatmul.mubr.f32.gmra.mrb[0].mxu0 %v1065
        %v1331 = vpop.f32.mrb[0].mxu0
        %v1332 = vadd.f32 0.0, %v1331
        %v1333 = vpop.f32.mrb[0].mxu0
        %v1334 = vadd.f32 0.0, %v1333
        %1335 = vdwg.mxu0
        %1336 = vmatprep.subr.mxu0 0.0
        %1337 = vmatpush1.xpose.msra.mxu0 %v1164
        %1338 = vmatprep.subr.mxu0 0.0
        %1339 = vmatpush1.xpose.msra.mxu0 %v1167
        %1340 = vmatprep.subr.mxu0 0.0
        %1341 = vmatpush1.xpose.msra.mxu0 %v1170
        %1342 = vmatprep.subr.mxu0 0.0
        %1343 = vmatpush1.xpose.msra.mxu0 %v1173
        %1344 = vmatprep.subr.mxu0 0.0
        %1345 = vmatpush1.xpose.msra.mxu0 %v1176
        %1346 = vmatprep.subr.mxu0 0.0
        %1347 = vmatpush1.xpose.msra.mxu0 %v1179
        %1348 = vmatprep.subr.mxu0 0.0
        %1349 = vmatpush1.xpose.msra.mxu0 %v1182
        %1350 = vmatprep.subr.mxu0 0.0
        %1351 = vmatpush1.xpose.msra.mxu0 %v1185
        %1352 = vmatprep.subr.mxu0 0.0
        %1353 = vmatpush1.xpose.msra.mxu0 %v1188
        %1354 = vmatprep.subr.mxu0 0.0
        %1355 = vmatpush1.xpose.msra.mxu0 %v1191
        %1356 = vmatprep.subr.mxu0 0.0
        %1357 = vmatpush1.xpose.msra.mxu0 %v1194
        %1358 = vmatprep.subr.mxu0 0.0
        %1359 = vmatpush1.xpose.msra.mxu0 %v1197
        %1360 = vmatprep.subr.mxu0 0.0
        %1361 = vmatpush1.xpose.msra.mxu0 %v1200
        %1362 = vmatprep.subr.mxu0 0.0
        %1363 = vmatpush1.xpose.msra.mxu0 %v1203
        %1364 = vmatprep.subr.mxu0 0.0
        %1365 = vmatpush1.xpose.msra.mxu0 %v1206
        %1366 = vmatprep.subr.mxu0 0.0
        %1367 = vmatpush1.xpose.msra.mxu0 %v1209
        %1368 = vmatprep.subr.mxu0 0.0
        %1369 = vmatpush1.xpose.msra.mxu0 %v1212
        %1370 = vmatprep.subr.mxu0 0.0
        %1371 = vmatpush1.xpose.msra.mxu0 %v1215
        %1372 = vmatprep.subr.mxu0 0.0
        %1373 = vmatpush1.xpose.msra.mxu0 %v1218
        %1374 = vmatprep.subr.mxu0 0.0
        %1375 = vmatpush1.xpose.msra.mxu0 %v1221
        %1376 = vmatprep.subr.mxu0 0.0
        %1377 = vmatpush1.xpose.msra.mxu0 %v1224
        %1378 = vmatprep.subr.mxu0 0.0
        %1379 = vmatpush1.xpose.msra.mxu0 %v1227
        %1380 = vmatprep.subr.mxu0 0.0
        %1381 = vmatpush1.xpose.msra.mxu0 %v1230
        %1382 = vmatprep.subr.mxu0 0.0
        %1383 = vmatpush1.xpose.msra.mxu0 %v1233
        %1384 = vmatprep.subr.mxu0 0.0
        %1385 = vmatpush1.xpose.msra.mxu0 %v1236
        %1386 = vmatprep.subr.mxu0 0.0
        %1387 = vmatpush1.xpose.msra.mxu0 %v1239
        %1388 = vmatprep.subr.mxu0 0.0
        %1389 = vmatpush1.xpose.msra.mxu0 %v1242
        %1390 = vmatprep.subr.mxu0 0.0
        %1391 = vmatpush1.xpose.msra.mxu0 %v1245
        %1392 = vmatprep.subr.mxu0 0.0
        %1393 = vmatpush1.xpose.msra.mxu0 %v1248
        %1394 = vmatprep.subr.mxu0 0.0
        %1395 = vmatpush1.xpose.msra.mxu0 %v1251
        %1396 = vmatprep.subr.mxu0 0.0
        %1397 = vmatpush1.xpose.msra.mxu0 %v1254
        %1398 = vmatprep.subr.mxu0 0.0
        %1399 = vmatpush1.xpose.msra.mxu0 %v1257
        %1400 = vmatprep.mubr.f32.mxu0 0.0
        %1401 = vmatmul.mubr.f32.gmra.mrb[0].mxu0 %v1062
        %v1402 = vpop.f32.mrb[0].mxu0
        %v1403 = vadd.f32 0.0, %v1402
        %v1404 = vpop.f32.mrb[0].mxu0
        %v1405 = vadd.f32 0.0, %v1404
        %1406 = vmatprep.mubr.f32.mxu0 0.0
        %1407 = vmatmul.mubr.f32.gmra.mrb[0].mxu0 %v1065
        %v1408 = vpop.f32.mrb[0].mxu0
        %v1409 = vadd.f32 0.0, %v1408
        %v1410 = vpop.f32.mrb[0].mxu0
        %v1411 = vadd.f32 0.0, %v1410
        %1412 = vdwg.mxu0
        %v1413 = vadd.f32 %v923, %v1326
        %v1414 = vadd.f32 %v924, %v1328
        %v1415 = vadd.f32 %v925, %v1403
        %v1416 = vadd.f32 %v926, %v1405
        %v1417 = vadd.f32 %v927, %v1332
        %v1418 = vadd.f32 %v928, %v1334
        %v1419 = vadd.f32 %v929, %v1409
        %v1420 = vadd.f32 %v930, %v1411
        %v1421 = vxor.u32 %v1413, 2147483648
        %v1422 = vxor.u32 %v1414, 2147483648
        %v1423 = vxor.u32 %v1415, 2147483648
        %v1424 = vxor.u32 %v1416, 2147483648
        %v1425 = vxor.u32 %v1417, 2147483648
        %v1426 = vxor.u32 %v1418, 2147483648
        %v1427 = vxor.u32 %v1419, 2147483648
        %v1428 = vxor.u32 %v1420, 2147483648
        %v1429 = vmul.f32 %v1421, 1.442695
        %v1430 = vpow.pop %v1429
        %v1431 = vmul.f32 %v1422, 1.442695
        %v1432 = vpow.pop %v1431
        %v1433 = vmul.f32 %v1423, 1.442695
        %v1434 = vpow.pop %v1433
        %v1435 = vmul.f32 %v1424, 1.442695
        %v1436 = vpow.pop %v1435
        %v1437 = vmul.f32 %v1425, 1.442695
        %v1438 = vpow.pop %v1437
        %v1439 = vmul.f32 %v1426, 1.442695
        %v1440 = vpow.pop %v1439
        %v1441 = vmul.f32 %v1427, 1.442695
        %v1442 = vpow.pop %v1441
        %v1443 = vmul.f32 %v1428, 1.442695
        %v1444 = vpow.pop %v1443
        %v1445 = vadd.f32 %v1430, 1.0
        %v1446 = vadd.f32 %v1432, 1.0
        %v1447 = vadd.f32 %v1434, 1.0
        %v1448 = vadd.f32 %v1436, 1.0
        %v1449 = vadd.f32 %v1438, 1.0
        %v1450 = vadd.f32 %v1440, 1.0
        %v1451 = vadd.f32 %v1442, 1.0
        %v1452 = vadd.f32 %v1444, 1.0
        %v1453 = vrcp.pop %v1445
        %v1454 = vmul.f32 1.0, %v1453
        %v1455 = vrcp.pop %v1446
        %v1456 = vmul.f32 1.0, %v1455
        %v1457 = vrcp.pop %v1447
        %v1458 = vmul.f32 1.0, %v1457
        %v1459 = vrcp.pop %v1448
        %v1460 = vmul.f32 1.0, %v1459
        %v1461 = vrcp.pop %v1449
        %v1462 = vmul.f32 1.0, %v1461
        %v1463 = vrcp.pop %v1450
        %v1464 = vmul.f32 1.0, %v1463
        %v1465 = vrcp.pop %v1451
        %v1466 = vmul.f32 1.0, %v1465
        %v1467 = vrcp.pop %v1452
        %v1468 = vmul.f32 1.0, %v1467
        %v1469 = vmul.f32 %v1413, %v1454
        %v1470 = vmul.f32 %v1414, %v1456
        %v1471 = vmul.f32 %v1415, %v1458
        %v1472 = vmul.f32 %v1416, %v1460
        %v1473 = vmul.f32 %v1417, %v1462
        %v1474 = vmul.f32 %v1418, %v1464
        %v1475 = vmul.f32 %v1419, %v1466
        %v1476 = vmul.f32 %v1420, %v1468
        %v1477 = vmul.f32 %v1469, 0.90909094
        %v1478 = vmul.f32 %v1470, 0.90909094
        %v1479 = vmul.f32 %v1471, 0.90909094
        %v1480 = vmul.f32 %v1472, 0.90909094
        %v1481 = vmul.f32 %v1473, 0.90909094
        %v1482 = vmul.f32 %v1474, 0.90909094
        %v1483 = vmul.f32 %v1475, 0.90909094
        %v1484 = vmul.f32 %v1476, 0.90909094
        %v1485 = vsub.f32 0.90909094, %v1477
        %v1486 = vsub.f32 0.90909094, %v1478
        %v1487 = vsub.f32 0.90909094, %v1479
        %v1488 = vsub.f32 0.90909094, %v1480
        %v1489 = vsub.f32 0.90909094, %v1481
        %v1490 = vsub.f32 0.90909094, %v1482
        %v1491 = vsub.f32 0.90909094, %v1483
        %v1492 = vsub.f32 0.90909094, %v1484
        %v1493 = vmul.f32 %v1454, %v1485
        %v1494 = vmul.f32 %v1456, %v1486
        %v1495 = vmul.f32 %v1458, %v1487
        %v1496 = vmul.f32 %v1460, %v1488
        %v1497 = vmul.f32 %v1462, %v1489
        %v1498 = vmul.f32 %v1464, %v1490
        %v1499 = vmul.f32 %v1466, %v1491
        %v1500 = vmul.f32 %v1468, %v1492
        %v1501 = vadd.f32 %v1477, %v1493
        %v1502 = vadd.f32 %v1478, %v1494
        %v1503 = vadd.f32 %v1479, %v1495
        %v1504 = vadd.f32 %v1480, %v1496
        %v1505 = vadd.f32 %v1481, %v1497
        %v1506 = vadd.f32 %v1482, %v1498
        %v1507 = vadd.f32 %v1483, %v1499
        %v1508 = vadd.f32 %v1484, %v1500
        %v1509 = vld [vmem:[%s11] sm:$0xff]
        %v1510 = vld [vmem:[%s11 + $0x8] sm:$0xff]
        %v1511 = vld [vmem:[%s11 + $0x10] sm:$0xff]
        %v1512 = vld [vmem:[%s11 + $0x18] sm:$0xff]
        %v1513 = vld [vmem:[%s11 + $0x20] sm:$0xff]
        %v1514 = vld [vmem:[%s11 + $0x28] sm:$0xff]
        %v1515 = vld [vmem:[%s11 + $0x30] sm:$0xff]
        %v1516 = vld [vmem:[%s11 + $0x38] sm:$0xff]
        %v1517 = vld [vmem:[%s11 + $0x40] sm:$0xff]
        %v1518 = vld [vmem:[%s11 + $0x48] sm:$0xff]
        %v1519 = vld [vmem:[%s11 + $0x50] sm:$0xff]
        %v1520 = vld [vmem:[%s11 + $0x58] sm:$0xff]
        %v1521 = vld [vmem:[%s11 + $0x60] sm:$0xff]
        %v1522 = vld [vmem:[%s11 + $0x68] sm:$0xff]
        %v1523 = vld [vmem:[%s11 + $0x70] sm:$0xff]
        %v1524 = vld [vmem:[%s11 + $0x78] sm:$0xff]
        %1526 = vset.pattern.permute.xlu0 0
        %1527 = vperm.xlu0 %1526, %v1509
        %v1528 = vpop.permute.xlu0 %1527
        %1531 = vset.pattern.permute.xlu0 0
        %1532 = vperm.xlu0 %1531, %v1510
        %v1533 = vpop.permute.xlu0 %1532
        %1536 = vset.pattern.permute.xlu0 0
        %1537 = vperm.xlu0 %1536, %v1511
        %v1538 = vpop.permute.xlu0 %1537
        %1541 = vset.pattern.permute.xlu0 0
        %1542 = vperm.xlu0 %1541, %v1512
        %v1543 = vpop.permute.xlu0 %1542
        %1546 = vset.pattern.permute.xlu0 0
        %1547 = vperm.xlu0 %1546, %v1513
        %v1548 = vpop.permute.xlu0 %1547
        %1551 = vset.pattern.permute.xlu0 0
        %1552 = vperm.xlu0 %1551, %v1514
        %v1553 = vpop.permute.xlu0 %1552
        %1556 = vset.pattern.permute.xlu0 0
        %1557 = vperm.xlu0 %1556, %v1515
        %v1558 = vpop.permute.xlu0 %1557
        %1561 = vset.pattern.permute.xlu0 0
        %1562 = vperm.xlu0 %1561, %v1516
        %v1563 = vpop.permute.xlu0 %1562
        %1566 = vset.pattern.permute.xlu0 0
        %1567 = vperm.xlu0 %1566, %v1517
        %v1568 = vpop.permute.xlu0 %1567
        %1571 = vset.pattern.permute.xlu0 0
        %1572 = vperm.xlu0 %1571, %v1518
        %v1573 = vpop.permute.xlu0 %1572
        %1576 = vset.pattern.permute.xlu0 0
        %1577 = vperm.xlu0 %1576, %v1519
        %v1578 = vpop.permute.xlu0 %1577
        %1581 = vset.pattern.permute.xlu0 0
        %1582 = vperm.xlu0 %1581, %v1520
        %v1583 = vpop.permute.xlu0 %1582
        %1586 = vset.pattern.permute.xlu0 0
        %1587 = vperm.xlu0 %1586, %v1521
        %v1588 = vpop.permute.xlu0 %1587
        %1591 = vset.pattern.permute.xlu0 0
        %1592 = vperm.xlu0 %1591, %v1522
        %v1593 = vpop.permute.xlu0 %1592
        %1596 = vset.pattern.permute.xlu0 0
        %1597 = vperm.xlu0 %1596, %v1523
        %v1598 = vpop.permute.xlu0 %1597
        %1601 = vset.pattern.permute.xlu0 0
        %1602 = vperm.xlu0 %1601, %v1524
        %v1603 = vpop.permute.xlu0 %1602
        %v1605 = vmul.f32 %v1501, %v1528
        %v1606 = vmul.f32 %v1502, %v1528
        %v1607 = vmul.f32 %v1503, %v1528
        %v1608 = vmul.f32 %v1504, %v1528
        %v1609 = vmul.f32 %v1505, %v1533
        %v1610 = vmul.f32 %v1506, %v1533
        %v1611 = vmul.f32 %v1507, %v1533
        %v1612 = vmul.f32 %v1508, %v1533
        %v1613 = vmul.f32 %v1501, %v1538
        %v1614 = vmul.f32 %v1502, %v1538
        %v1615 = vmul.f32 %v1503, %v1538
        %v1616 = vmul.f32 %v1504, %v1538
        %v1617 = vmul.f32 %v1505, %v1543
        %v1618 = vmul.f32 %v1506, %v1543
        %v1619 = vmul.f32 %v1507, %v1543
        %v1620 = vmul.f32 %v1508, %v1543
        %v1621 = vmul.f32 %v1501, %v1548
        %v1622 = vmul.f32 %v1502, %v1548
        %v1623 = vmul.f32 %v1503, %v1548
        %v1624 = vmul.f32 %v1504, %v1548
        %v1625 = vmul.f32 %v1505, %v1553
        %v1626 = vmul.f32 %v1506, %v1553
        %v1627 = vmul.f32 %v1507, %v1553
        %v1628 = vmul.f32 %v1508, %v1553
        %v1629 = vmul.f32 %v1501, %v1558
        %v1630 = vmul.f32 %v1502, %v1558
        %v1631 = vmul.f32 %v1503, %v1558
        %v1632 = vmul.f32 %v1504, %v1558
        %v1633 = vmul.f32 %v1505, %v1563
        %v1634 = vmul.f32 %v1506, %v1563
        %v1635 = vmul.f32 %v1507, %v1563
        %v1636 = vmul.f32 %v1508, %v1563
        %v1637 = vmul.f32 %v1501, %v1568
        %v1638 = vmul.f32 %v1502, %v1568
        %v1639 = vmul.f32 %v1503, %v1568
        %v1640 = vmul.f32 %v1504, %v1568
        %v1641 = vmul.f32 %v1505, %v1573
        %v1642 = vmul.f32 %v1506, %v1573
        %v1643 = vmul.f32 %v1507, %v1573
        %v1644 = vmul.f32 %v1508, %v1573
        %v1645 = vmul.f32 %v1501, %v1578
        %v1646 = vmul.f32 %v1502, %v1578
        %v1647 = vmul.f32 %v1503, %v1578
        %v1648 = vmul.f32 %v1504, %v1578
        %v1649 = vmul.f32 %v1505, %v1583
        %v1650 = vmul.f32 %v1506, %v1583
        %v1651 = vmul.f32 %v1507, %v1583
        %v1652 = vmul.f32 %v1508, %v1583
        %v1653 = vmul.f32 %v1501, %v1588
        %v1654 = vmul.f32 %v1502, %v1588
        %v1655 = vmul.f32 %v1503, %v1588
        %v1656 = vmul.f32 %v1504, %v1588
        %v1657 = vmul.f32 %v1505, %v1593
        %v1658 = vmul.f32 %v1506, %v1593
        %v1659 = vmul.f32 %v1507, %v1593
        %v1660 = vmul.f32 %v1508, %v1593
        %v1661 = vmul.f32 %v1501, %v1598
        %v1662 = vmul.f32 %v1502, %v1598
        %v1663 = vmul.f32 %v1503, %v1598
        %v1664 = vmul.f32 %v1504, %v1598
        %v1665 = vmul.f32 %v1505, %v1603
        %v1666 = vmul.f32 %v1506, %v1603
        %v1667 = vmul.f32 %v1507, %v1603
        %v1668 = vmul.f32 %v1508, %v1603
        %v1669 = vld [vmem:[%s5] sm:$0xff]
        %v1670 = vld [vmem:[%s5 + $0x8] sm:$0xff]
        %v1671 = vld [vmem:[%s6] sm:$0xff]
        %v1672 = vld [vmem:[%s6 + $0x8] sm:$0xff]
        %1674 = vset.pattern.permute.xlu0 0
        %1675 = vperm.xlu0 %1674, %v1671
        %v1676 = vpop.permute.xlu0 %1675
        %1679 = vset.pattern.permute.xlu0 0
        %1680 = vperm.xlu0 %1679, %v1672
        %v1681 = vpop.permute.xlu0 %1680
        %vm1683 = vcmask 130048
        %v1685 = vsel %vm1683, %v1669, 0
        %v1688 = vsel %vm1683, %v1670, 0
        %1690 = vmatprep.subr.mxu0 %v1478
        %1691 = vmatpush1.msra.mxu0 %v1477
        %1692 = vmatprep.subr.mxu0 %v1482
        %1693 = vmatpush1.msra.mxu0 %v1481
        %1694 = vmatprep.subr.mxu0 0.0
        %1695 = vmatpush1.msra.mxu0 0.0
        %1696 = vmatprep.subr.mxu0 0.0
        %1697 = vmatpush1.msra.mxu0 0.0
        %1698 = vmatprep.subr.mxu0 0.0
        %1699 = vmatpush1.msra.mxu0 0.0
        %1700 = vmatprep.subr.mxu0 0.0
        %1701 = vmatpush1.msra.mxu0 0.0
        %1702 = vmatprep.subr.mxu0 0.0
        %1703 = vmatpush1.msra.mxu0 0.0
        %1704 = vmatprep.subr.mxu0 0.0
        %1705 = vmatpush1.msra.mxu0 0.0
        %1706 = vmatprep.subr.mxu0 0.0
        %1707 = vmatpush1.msra.mxu0 0.0
        %1708 = vmatprep.subr.mxu0 0.0
        %1709 = vmatpush1.msra.mxu0 0.0
        %1710 = vmatprep.subr.mxu0 0.0
        %1711 = vmatpush1.msra.mxu0 0.0
        %1712 = vmatprep.subr.mxu0 0.0
        %1713 = vmatpush1.msra.mxu0 0.0
        %1714 = vmatprep.subr.mxu0 0.0
        %1715 = vmatpush1.msra.mxu0 0.0
        %1716 = vmatprep.subr.mxu0 0.0
        %1717 = vmatpush1.msra.mxu0 0.0
        %1718 = vmatprep.subr.mxu0 0.0
        %1719 = vmatpush1.msra.mxu0 0.0
        %1720 = vmatprep.subr.mxu0 0.0
        %1721 = vmatpush1.msra.mxu0 0.0
        %1722 = vmatprep.subr.mxu0 0.0
        %1723 = vmatpush1.msra.mxu0 0.0
        %1724 = vmatprep.subr.mxu0 0.0
        %1725 = vmatpush1.msra.mxu0 0.0
        %1726 = vmatprep.subr.mxu0 0.0
        %1727 = vmatpush1.msra.mxu0 0.0
        %1728 = vmatprep.subr.mxu0 0.0
        %1729 = vmatpush1.msra.mxu0 0.0
        %1730 = vmatprep.subr.mxu0 0.0
        %1731 = vmatpush1.msra.mxu0 0.0
        %1732 = vmatprep.subr.mxu0 0.0
        %1733 = vmatpush1.msra.mxu0 0.0
        %1734 = vmatprep.subr.mxu0 0.0
        %1735 = vmatpush1.msra.mxu0 0.0
        %1736 = vmatprep.subr.mxu0 0.0
        %1737 = vmatpush1.msra.mxu0 0.0
        %1738 = vmatprep.subr.mxu0 0.0
        %1739 = vmatpush1.msra.mxu0 0.0
        %1740 = vmatprep.subr.mxu0 0.0
        %1741 = vmatpush1.msra.mxu0 0.0
        %1742 = vmatprep.subr.mxu0 0.0
        %1743 = vmatpush1.msra.mxu0 0.0
        %1744 = vmatprep.subr.mxu0 0.0
        %1745 = vmatpush1.msra.mxu0 0.0
        %1746 = vmatprep.subr.mxu0 0.0
        %1747 = vmatpush1.msra.mxu0 0.0
        %1748 = vmatprep.subr.mxu0 0.0
        %1749 = vmatpush1.msra.mxu0 0.0
        %1750 = vmatprep.subr.mxu0 0.0
        %1751 = vmatpush1.msra.mxu0 0.0
        %1752 = vmatprep.subr.mxu0 0.0
        %1753 = vmatpush1.msra.mxu0 0.0
        %1754 = vmatprep.mubr.f32.mxu0 0.0
        %1755 = vmatmul.mubr.f32.gmra.mrb[0].mxu0 %v1685
        %v1756 = vpop.f32.mrb[0].mxu0
        %v1757 = vadd.f32 %v1676, %v1756
        %v1758 = vpop.f32.mrb[0].mxu0
        %v1759 = vadd.f32 %v1676, %v1758
        %1760 = vmatprep.mubr.f32.mxu0 0.0
        %1761 = vmatmul.mubr.f32.gmra.mrb[0].mxu0 %v1688
        %v1762 = vpop.f32.mrb[0].mxu0
        %v1763 = vadd.f32 %v1681, %v1762
        %v1764 = vpop.f32.mrb[0].mxu0
        %v1765 = vadd.f32 %v1681, %v1764
        %1766 = vdwg.mxu0
        %1767 = vmatprep.subr.mxu0 %v1480
        %1768 = vmatpush1.msra.mxu0 %v1479
        %1769 = vmatprep.subr.mxu0 %v1484
        %1770 = vmatpush1.msra.mxu0 %v1483
        %1771 = vmatprep.subr.mxu0 0.0
        %1772 = vmatpush1.msra.mxu0 0.0
        %1773 = vmatprep.subr.mxu0 0.0
        %1774 = vmatpush1.msra.mxu0 0.0
        %1775 = vmatprep.subr.mxu0 0.0
        %1776 = vmatpush1.msra.mxu0 0.0
        %1777 = vmatprep.subr.mxu0 0.0
        %1778 = vmatpush1.msra.mxu0 0.0
        %1779 = vmatprep.subr.mxu0 0.0
        %1780 = vmatpush1.msra.mxu0 0.0
        %1781 = vmatprep.subr.mxu0 0.0
        %1782 = vmatpush1.msra.mxu0 0.0
        %1783 = vmatprep.subr.mxu0 0.0
        %1784 = vmatpush1.msra.mxu0 0.0
        %1785 = vmatprep.subr.mxu0 0.0
        %1786 = vmatpush1.msra.mxu0 0.0
        %1787 = vmatprep.subr.mxu0 0.0
        %1788 = vmatpush1.msra.mxu0 0.0
        %1789 = vmatprep.subr.mxu0 0.0
        %1790 = vmatpush1.msra.mxu0 0.0
        %1791 = vmatprep.subr.mxu0 0.0
        %1792 = vmatpush1.msra.mxu0 0.0
        %1793 = vmatprep.subr.mxu0 0.0
        %1794 = vmatpush1.msra.mxu0 0.0
        %1795 = vmatprep.subr.mxu0 0.0
        %1796 = vmatpush1.msra.mxu0 0.0
        %1797 = vmatprep.subr.mxu0 0.0
        %1798 = vmatpush1.msra.mxu0 0.0
        %1799 = vmatprep.subr.mxu0 0.0
        %1800 = vmatpush1.msra.mxu0 0.0
        %1801 = vmatprep.subr.mxu0 0.0
        %1802 = vmatpush1.msra.mxu0 0.0
        %1803 = vmatprep.subr.mxu0 0.0
        %1804 = vmatpush1.msra.mxu0 0.0
        %1805 = vmatprep.subr.mxu0 0.0
        %1806 = vmatpush1.msra.mxu0 0.0
        %1807 = vmatprep.subr.mxu0 0.0
        %1808 = vmatpush1.msra.mxu0 0.0
        %1809 = vmatprep.subr.mxu0 0.0
        %1810 = vmatpush1.msra.mxu0 0.0
        %1811 = vmatprep.subr.mxu0 0.0
        %1812 = vmatpush1.msra.mxu0 0.0
        %1813 = vmatprep.subr.mxu0 0.0
        %1814 = vmatpush1.msra.mxu0 0.0
        %1815 = vmatprep.subr.mxu0 0.0
        %1816 = vmatpush1.msra.mxu0 0.0
        %1817 = vmatprep.subr.mxu0 0.0
        %1818 = vmatpush1.msra.mxu0 0.0
        %1819 = vmatprep.subr.mxu0 0.0
        %1820 = vmatpush1.msra.mxu0 0.0
        %1821 = vmatprep.subr.mxu0 0.0
        %1822 = vmatpush1.msra.mxu0 0.0
        %1823 = vmatprep.subr.mxu0 0.0
        %1824 = vmatpush1.msra.mxu0 0.0
        %1825 = vmatprep.subr.mxu0 0.0
        %1826 = vmatpush1.msra.mxu0 0.0
        %1827 = vmatprep.subr.mxu0 0.0
        %1828 = vmatpush1.msra.mxu0 0.0
        %1829 = vmatprep.subr.mxu0 0.0
        %1830 = vmatpush1.msra.mxu0 0.0
        %1831 = vmatprep.mubr.f32.mxu0 0.0
        %1832 = vmatmul.mubr.f32.gmra.mrb[0].mxu0 %v1685
        %v1833 = vpop.f32.mrb[0].mxu0
        %v1834 = vadd.f32 %v1676, %v1833
        %v1835 = vpop.f32.mrb[0].mxu0
        %v1836 = vadd.f32 %v1676, %v1835
        %1837 = vmatprep.mubr.f32.mxu0 0.0
        %1838 = vmatmul.mubr.f32.gmra.mrb[0].mxu0 %v1688
        %v1839 = vpop.f32.mrb[0].mxu0
        %v1840 = vadd.f32 %v1681, %v1839
        %v1841 = vpop.f32.mrb[0].mxu0
        %v1842 = vadd.f32 %v1681, %v1841
        %1843 = vdwg.mxu0
        %v1844 = vxor.u32 %v1757, 2147483648
        %v1845 = vxor.u32 %v1759, 2147483648
        %v1846 = vxor.u32 %v1834, 2147483648
        %v1847 = vxor.u32 %v1836, 2147483648
        %v1848 = vxor.u32 %v1763, 2147483648
        %v1849 = vxor.u32 %v1765, 2147483648
        %v1850 = vxor.u32 %v1840, 2147483648
        %v1851 = vxor.u32 %v1842, 2147483648
        %v1852 = vmul.f32 %v1844, 1.442695
        %v1853 = vpow.pop %v1852
        %v1854 = vmul.f32 %v1845, 1.442695
        %v1855 = vpow.pop %v1854
        %v1856 = vmul.f32 %v1846, 1.442695
        %v1857 = vpow.pop %v1856
        %v1858 = vmul.f32 %v1847, 1.442695
        %v1859 = vpow.pop %v1858
        %v1860 = vmul.f32 %v1848, 1.442695
        %v1861 = vpow.pop %v1860
        %v1862 = vmul.f32 %v1849, 1.442695
        %v1863 = vpow.pop %v1862
        %v1864 = vmul.f32 %v1850, 1.442695
        %v1865 = vpow.pop %v1864
        %v1866 = vmul.f32 %v1851, 1.442695
        %v1867 = vpow.pop %v1866
        %v1868 = vadd.f32 %v1853, 1.0
        %v1869 = vadd.f32 %v1855, 1.0
        %v1870 = vadd.f32 %v1857, 1.0
        %v1871 = vadd.f32 %v1859, 1.0
        %v1872 = vadd.f32 %v1861, 1.0
        %v1873 = vadd.f32 %v1863, 1.0
        %v1874 = vadd.f32 %v1865, 1.0
        %v1875 = vadd.f32 %v1867, 1.0
        %v1876 = vrcp.pop %v1868
        %v1877 = vmul.f32 1.0, %v1876
        %v1878 = vrcp.pop %v1869
        %v1879 = vmul.f32 1.0, %v1878
        %v1880 = vrcp.pop %v1870
        %v1881 = vmul.f32 1.0, %v1880
        %v1882 = vrcp.pop %v1871
        %v1883 = vmul.f32 1.0, %v1882
        %v1884 = vrcp.pop %v1872
        %v1885 = vmul.f32 1.0, %v1884
        %v1886 = vrcp.pop %v1873
        %v1887 = vmul.f32 1.0, %v1886
        %v1888 = vrcp.pop %v1874
        %v1889 = vmul.f32 1.0, %v1888
        %v1890 = vrcp.pop %v1875
        %v1891 = vmul.f32 1.0, %v1890
        %v1892 = vmul.f32 %v1757, %v1877
        %v1893 = vmul.f32 %v1759, %v1879
        %v1894 = vmul.f32 %v1834, %v1881
        %v1895 = vmul.f32 %v1836, %v1883
        %v1896 = vmul.f32 %v1763, %v1885
        %v1897 = vmul.f32 %v1765, %v1887
        %v1898 = vmul.f32 %v1840, %v1889
        %v1899 = vmul.f32 %v1842, %v1891
        %v1900 = vmul.f32 %v1892, 0.90909094
        %v1901 = vmul.f32 %v1893, 0.90909094
        %v1902 = vmul.f32 %v1894, 0.90909094
        %v1903 = vmul.f32 %v1895, 0.90909094
        %v1904 = vmul.f32 %v1896, 0.90909094
        %v1905 = vmul.f32 %v1897, 0.90909094
        %v1906 = vmul.f32 %v1898, 0.90909094
        %v1907 = vmul.f32 %v1899, 0.90909094
        %v1908 = vsub.f32 0.90909094, %v1900
        %v1909 = vsub.f32 0.90909094, %v1901
        %v1910 = vsub.f32 0.90909094, %v1902
        %v1911 = vsub.f32 0.90909094, %v1903
        %v1912 = vsub.f32 0.90909094, %v1904
        %v1913 = vsub.f32 0.90909094, %v1905
        %v1914 = vsub.f32 0.90909094, %v1906
        %v1915 = vsub.f32 0.90909094, %v1907
        %v1916 = vmul.f32 %v1877, %v1908
        %v1917 = vmul.f32 %v1879, %v1909
        %v1918 = vmul.f32 %v1881, %v1910
        %v1919 = vmul.f32 %v1883, %v1911
        %v1920 = vmul.f32 %v1885, %v1912
        %v1921 = vmul.f32 %v1887, %v1913
        %v1922 = vmul.f32 %v1889, %v1914
        %v1923 = vmul.f32 %v1891, %v1915
        %v1924 = vadd.f32 %v1900, %v1916
        %v1925 = vadd.f32 %v1901, %v1917
        %v1926 = vadd.f32 %v1902, %v1918
        %v1927 = vadd.f32 %v1903, %v1919
        %v1928 = vadd.f32 %v1904, %v1920
        %v1929 = vadd.f32 %v1905, %v1921
        %v1930 = vadd.f32 %v1906, %v1922
        %v1931 = vadd.f32 %v1907, %v1923
        %v1932 = vld [vmem:[%s7] sm:$0xff]
        %v1933 = vld [vmem:[%s7 + $0x8] sm:$0xff]
        %v1934 = vld [vmem:[%s7 + $0x10] sm:$0xff]
        %v1935 = vld [vmem:[%s7 + $0x18] sm:$0xff]
        %v1936 = vld [vmem:[%s7 + $0x20] sm:$0xff]
        %v1937 = vld [vmem:[%s7 + $0x28] sm:$0xff]
        %v1938 = vld [vmem:[%s7 + $0x30] sm:$0xff]
        %v1939 = vld [vmem:[%s7 + $0x38] sm:$0xff]
        %v1940 = vld [vmem:[%s7 + $0x40] sm:$0xff]
        %v1941 = vld [vmem:[%s7 + $0x48] sm:$0xff]
        %v1942 = vld [vmem:[%s7 + $0x50] sm:$0xff]
        %v1943 = vld [vmem:[%s7 + $0x58] sm:$0xff]
        %v1944 = vld [vmem:[%s7 + $0x60] sm:$0xff]
        %v1945 = vld [vmem:[%s7 + $0x68] sm:$0xff]
        %v1946 = vld [vmem:[%s7 + $0x70] sm:$0xff]
        %v1947 = vld [vmem:[%s7 + $0x78] sm:$0xff]
        %1948 = vmatprep.subr.mxu0 %v1606
        %1949 = vmatpush1.msra.mxu0 %v1605
        %1950 = vmatprep.subr.mxu0 %v1610
        %1951 = vmatpush1.msra.mxu0 %v1609
        %1952 = vmatprep.subr.mxu0 %v1614
        %1953 = vmatpush1.msra.mxu0 %v1613
        %1954 = vmatprep.subr.mxu0 %v1618
        %1955 = vmatpush1.msra.mxu0 %v1617
        %1956 = vmatprep.subr.mxu0 %v1622
        %1957 = vmatpush1.msra.mxu0 %v1621
        %1958 = vmatprep.subr.mxu0 %v1626
        %1959 = vmatpush1.msra.mxu0 %v1625
        %1960 = vmatprep.subr.mxu0 %v1630
        %1961 = vmatpush1.msra.mxu0 %v1629
        %1962 = vmatprep.subr.mxu0 %v1634
        %1963 = vmatpush1.msra.mxu0 %v1633
        %1964 = vmatprep.subr.mxu0 %v1638
        %1965 = vmatpush1.msra.mxu0 %v1637
        %1966 = vmatprep.subr.mxu0 %v1642
        %1967 = vmatpush1.msra.mxu0 %v1641
        %1968 = vmatprep.subr.mxu0 %v1646
        %1969 = vmatpush1.msra.mxu0 %v1645
        %1970 = vmatprep.subr.mxu0 %v1650
        %1971 = vmatpush1.msra.mxu0 %v1649
        %1972 = vmatprep.subr.mxu0 %v1654
        %1973 = vmatpush1.msra.mxu0 %v1653
        %1974 = vmatprep.subr.mxu0 %v1658
        %1975 = vmatpush1.msra.mxu0 %v1657
        %1976 = vmatprep.subr.mxu0 %v1662
        %1977 = vmatpush1.msra.mxu0 %v1661
        %1978 = vmatprep.subr.mxu0 %v1666
        %1979 = vmatpush1.msra.mxu0 %v1665
        %1980 = vmatprep.subr.mxu0 0.0
        %1981 = vmatpush1.msra.mxu0 0.0
        %1982 = vmatprep.subr.mxu0 0.0
        %1983 = vmatpush1.msra.mxu0 0.0
        %1984 = vmatprep.subr.mxu0 0.0
        %1985 = vmatpush1.msra.mxu0 0.0
        %1986 = vmatprep.subr.mxu0 0.0
        %1987 = vmatpush1.msra.mxu0 0.0
        %1988 = vmatprep.subr.mxu0 0.0
        %1989 = vmatpush1.msra.mxu0 0.0
        %1990 = vmatprep.subr.mxu0 0.0
        %1991 = vmatpush1.msra.mxu0 0.0
        %1992 = vmatprep.subr.mxu0 0.0
        %1993 = vmatpush1.msra.mxu0 0.0
        %1994 = vmatprep.subr.mxu0 0.0
        %1995 = vmatpush1.msra.mxu0 0.0
        %1996 = vmatprep.subr.mxu0 0.0
        %1997 = vmatpush1.msra.mxu0 0.0
        %1998 = vmatprep.subr.mxu0 0.0
        %1999 = vmatpush1.msra.mxu0 0.0
        %2000 = vmatprep.subr.mxu0 0.0
        %2001 = vmatpush1.msra.mxu0 0.0
        %2002 = vmatprep.subr.mxu0 0.0
        %2003 = vmatpush1.msra.mxu0 0.0
        %2004 = vmatprep.subr.mxu0 0.0
        %2005 = vmatpush1.msra.mxu0 0.0
        %2006 = vmatprep.subr.mxu0 0.0
        %2007 = vmatpush1.msra.mxu0 0.0
        %2008 = vmatprep.subr.mxu0 0.0
        %2009 = vmatpush1.msra.mxu0 0.0
        %2010 = vmatprep.subr.mxu0 0.0
        %2011 = vmatpush1.msra.mxu0 0.0
        %2012 = vmatprep.mubr.f32.mxu0 0.0
        %2013 = vmatmul.mubr.f32.gmra.mrb[0].mxu0 %v1932
        %v2014 = vpop.f32.mrb[0].mxu0
        %v2015 = vadd.f32 0.0, %v2014
        %v2016 = vpop.f32.mrb[0].mxu0
        %v2017 = vadd.f32 0.0, %v2016
        %2018 = vmatprep.mubr.f32.mxu0 0.0
        %2019 = vmatmul.mubr.f32.gmra.mrb[0].mxu0 %v1933
        %v2020 = vpop.f32.mrb[0].mxu0
        %v2021 = vadd.f32 0.0, %v2020
        %v2022 = vpop.f32.mrb[0].mxu0
        %v2023 = vadd.f32 0.0, %v2022
        %2024 = vmatprep.mubr.f32.mxu0 0.0
        %2025 = vmatmul.mubr.f32.gmra.mrb[0].mxu0 %v1934
        %v2026 = vpop.f32.mrb[0].mxu0
        %v2027 = vadd.f32 0.0, %v2026
        %v2028 = vpop.f32.mrb[0].mxu0
        %v2029 = vadd.f32 0.0, %v2028
        %2030 = vmatprep.mubr.f32.mxu0 0.0
        %2031 = vmatmul.mubr.f32.gmra.mrb[0].mxu0 %v1935
        %v2032 = vpop.f32.mrb[0].mxu0
        %v2033 = vadd.f32 0.0, %v2032
        %v2034 = vpop.f32.mrb[0].mxu0
        %v2035 = vadd.f32 0.0, %v2034
        %2036 = vmatprep.mubr.f32.mxu0 0.0
        %2037 = vmatmul.mubr.f32.gmra.mrb[0].mxu0 %v1936
        %v2038 = vpop.f32.mrb[0].mxu0
        %v2039 = vadd.f32 0.0, %v2038
        %v2040 = vpop.f32.mrb[0].mxu0
        %v2041 = vadd.f32 0.0, %v2040
        %2042 = vmatprep.mubr.f32.mxu0 0.0
        %2043 = vmatmul.mubr.f32.gmra.mrb[0].mxu0 %v1937
        %v2044 = vpop.f32.mrb[0].mxu0
        %v2045 = vadd.f32 0.0, %v2044
        %v2046 = vpop.f32.mrb[0].mxu0
        %v2047 = vadd.f32 0.0, %v2046
        %2048 = vmatprep.mubr.f32.mxu0 0.0
        %2049 = vmatmul.mubr.f32.gmra.mrb[0].mxu0 %v1938
        %v2050 = vpop.f32.mrb[0].mxu0
        %v2051 = vadd.f32 0.0, %v2050
        %v2052 = vpop.f32.mrb[0].mxu0
        %v2053 = vadd.f32 0.0, %v2052
        %2054 = vmatprep.mubr.f32.mxu0 0.0
        %2055 = vmatmul.mubr.f32.gmra.mrb[0].mxu0 %v1939
        %v2056 = vpop.f32.mrb[0].mxu0
        %v2057 = vadd.f32 0.0, %v2056
        %v2058 = vpop.f32.mrb[0].mxu0
        %v2059 = vadd.f32 0.0, %v2058
        %2060 = vmatprep.mubr.f32.mxu0 0.0
        %2061 = vmatmul.mubr.f32.gmra.mrb[0].mxu0 %v1940
        %v2062 = vpop.f32.mrb[0].mxu0
        %v2063 = vadd.f32 0.0, %v2062
        %v2064 = vpop.f32.mrb[0].mxu0
        %v2065 = vadd.f32 0.0, %v2064
        %2066 = vmatprep.mubr.f32.mxu0 0.0
        %2067 = vmatmul.mubr.f32.gmra.mrb[0].mxu0 %v1941
        %v2068 = vpop.f32.mrb[0].mxu0
        %v2069 = vadd.f32 0.0, %v2068
        %v2070 = vpop.f32.mrb[0].mxu0
        %v2071 = vadd.f32 0.0, %v2070
        %2072 = vmatprep.mubr.f32.mxu0 0.0
        %2073 = vmatmul.mubr.f32.gmra.mrb[0].mxu0 %v1942
        %v2074 = vpop.f32.mrb[0].mxu0
        %v2075 = vadd.f32 0.0, %v2074
        %v2076 = vpop.f32.mrb[0].mxu0
        %v2077 = vadd.f32 0.0, %v2076
        %2078 = vmatprep.mubr.f32.mxu0 0.0
        %2079 = vmatmul.mubr.f32.gmra.mrb[0].mxu0 %v1943
        %v2080 = vpop.f32.mrb[0].mxu0
        %v2081 = vadd.f32 0.0, %v2080
        %v2082 = vpop.f32.mrb[0].mxu0
        %v2083 = vadd.f32 0.0, %v2082
        %2084 = vmatprep.mubr.f32.mxu0 0.0
        %2085 = vmatmul.mubr.f32.gmra.mrb[0].mxu0 %v1944
        %v2086 = vpop.f32.mrb[0].mxu0
        %v2087 = vadd.f32 0.0, %v2086
        %v2088 = vpop.f32.mrb[0].mxu0
        %v2089 = vadd.f32 0.0, %v2088
        %2090 = vmatprep.mubr.f32.mxu0 0.0
        %2091 = vmatmul.mubr.f32.gmra.mrb[0].mxu0 %v1945
        %v2092 = vpop.f32.mrb[0].mxu0
        %v2093 = vadd.f32 0.0, %v2092
        %v2094 = vpop.f32.mrb[0].mxu0
        %v2095 = vadd.f32 0.0, %v2094
        %2096 = vmatprep.mubr.f32.mxu0 0.0
        %2097 = vmatmul.mubr.f32.gmra.mrb[0].mxu0 %v1946
        %v2098 = vpop.f32.mrb[0].mxu0
        %v2099 = vadd.f32 0.0, %v2098
        %v2100 = vpop.f32.mrb[0].mxu0
        %v2101 = vadd.f32 0.0, %v2100
        %2102 = vmatprep.mubr.f32.mxu0 0.0
        %2103 = vmatmul.mubr.f32.gmra.mrb[0].mxu0 %v1947
        %v2104 = vpop.f32.mrb[0].mxu0
        %v2105 = vadd.f32 0.0, %v2104
        %v2106 = vpop.f32.mrb[0].mxu0
        %v2107 = vadd.f32 0.0, %v2106
        %2108 = vdwg.mxu0
        %2109 = vmatprep.subr.mxu0 %v1608
        %2110 = vmatpush1.msra.mxu0 %v1607
        %2111 = vmatprep.subr.mxu0 %v1612
        %2112 = vmatpush1.msra.mxu0 %v1611
        %2113 = vmatprep.subr.mxu0 %v1616
        %2114 = vmatpush1.msra.mxu0 %v1615
        %2115 = vmatprep.subr.mxu0 %v1620
        %2116 = vmatpush1.msra.mxu0 %v1619
        %2117 = vmatprep.subr.mxu0 %v1624
        %2118 = vmatpush1.msra.mxu0 %v1623
        %2119 = vmatprep.subr.mxu0 %v1628
        %2120 = vmatpush1.msra.mxu0 %v1627
        %2121 = vmatprep.subr.mxu0 %v1632
        %2122 = vmatpush1.msra.mxu0 %v1631
        %2123 = vmatprep.subr.mxu0 %v1636
        %2124 = vmatpush1.msra.mxu0 %v1635
        %2125 = vmatprep.subr.mxu0 %v1640
        %2126 = vmatpush1.msra.mxu0 %v1639
        %2127 = vmatprep.subr.mxu0 %v1644
        %2128 = vmatpush1.msra.mxu0 %v1643
        %2129 = vmatprep.subr.mxu0 %v1648
        %2130 = vmatpush1.msra.mxu0 %v1647
        %2131 = vmatprep.subr.mxu0 %v1652
        %2132 = vmatpush1.msra.mxu0 %v1651
        %2133 = vmatprep.subr.mxu0 %v1656
        %2134 = vmatpush1.msra.mxu0 %v1655
        %2135 = vmatprep.subr.mxu0 %v1660
        %2136 = vmatpush1.msra.mxu0 %v1659
        %2137 = vmatprep.subr.mxu0 %v1664
        %2138 = vmatpush1.msra.mxu0 %v1663
        %2139 = vmatprep.subr.mxu0 %v1668
        %2140 = vmatpush1.msra.mxu0 %v1667
        %2141 = vmatprep.subr.mxu0 0.0
        %2142 = vmatpush1.msra.mxu0 0.0
        %2143 = vmatprep.subr.mxu0 0.0
        %2144 = vmatpush1.msra.mxu0 0.0
        %2145 = vmatprep.subr.mxu0 0.0
        %2146 = vmatpush1.msra.mxu0 0.0
        %2147 = vmatprep.subr.mxu0 0.0
        %2148 = vmatpush1.msra.mxu0 0.0
        %2149 = vmatprep.subr.mxu0 0.0
        %2150 = vmatpush1.msra.mxu0 0.0
        %2151 = vmatprep.subr.mxu0 0.0
        %2152 = vmatpush1.msra.mxu0 0.0
        %2153 = vmatprep.subr.mxu0 0.0
        %2154 = vmatpush1.msra.mxu0 0.0
        %2155 = vmatprep.subr.mxu0 0.0
        %2156 = vmatpush1.msra.mxu0 0.0
        %2157 = vmatprep.subr.mxu0 0.0
        %2158 = vmatpush1.msra.mxu0 0.0
        %2159 = vmatprep.subr.mxu0 0.0
        %2160 = vmatpush1.msra.mxu0 0.0
        %2161 = vmatprep.subr.mxu0 0.0
        %2162 = vmatpush1.msra.mxu0 0.0
        %2163 = vmatprep.subr.mxu0 0.0
        %2164 = vmatpush1.msra.mxu0 0.0
        %2165 = vmatprep.subr.mxu0 0.0
        %2166 = vmatpush1.msra.mxu0 0.0
        %2167 = vmatprep.subr.mxu0 0.0
        %2168 = vmatpush1.msra.mxu0 0.0
        %2169 = vmatprep.subr.mxu0 0.0
        %2170 = vmatpush1.msra.mxu0 0.0
        %2171 = vmatprep.subr.mxu0 0.0
        %2172 = vmatpush1.msra.mxu0 0.0
        %2173 = vmatprep.mubr.f32.mxu0 0.0
        %2174 = vmatmul.mubr.f32.gmra.mrb[0].mxu0 %v1932
        %v2175 = vpop.f32.mrb[0].mxu0
        %v2176 = vadd.f32 0.0, %v2175
        %v2177 = vpop.f32.mrb[0].mxu0
        %v2178 = vadd.f32 0.0, %v2177
        %2179 = vmatprep.mubr.f32.mxu0 0.0
        %2180 = vmatmul.mubr.f32.gmra.mrb[0].mxu0 %v1933
        %v2181 = vpop.f32.mrb[0].mxu0
        %v2182 = vadd.f32 0.0, %v2181
        %v2183 = vpop.f32.mrb[0].mxu0
        %v2184 = vadd.f32 0.0, %v2183
        %2185 = vmatprep.mubr.f32.mxu0 0.0
        %2186 = vmatmul.mubr.f32.gmra.mrb[0].mxu0 %v1934
        %v2187 = vpop.f32.mrb[0].mxu0
        %v2188 = vadd.f32 0.0, %v2187
        %v2189 = vpop.f32.mrb[0].mxu0
        %v2190 = vadd.f32 0.0, %v2189
        %2191 = vmatprep.mubr.f32.mxu0 0.0
        %2192 = vmatmul.mubr.f32.gmra.mrb[0].mxu0 %v1935
        %v2193 = vpop.f32.mrb[0].mxu0
        %v2194 = vadd.f32 0.0, %v2193
        %v2195 = vpop.f32.mrb[0].mxu0
        %v2196 = vadd.f32 0.0, %v2195
        %2197 = vmatprep.mubr.f32.mxu0 0.0
        %2198 = vmatmul.mubr.f32.gmra.mrb[0].mxu0 %v1936
        %v2199 = vpop.f32.mrb[0].mxu0
        %v2200 = vadd.f32 0.0, %v2199
        %v2201 = vpop.f32.mrb[0].mxu0
        %v2202 = vadd.f32 0.0, %v2201
        %2203 = vmatprep.mubr.f32.mxu0 0.0
        %2204 = vmatmul.mubr.f32.gmra.mrb[0].mxu0 %v1937
        %v2205 = vpop.f32.mrb[0].mxu0
        %v2206 = vadd.f32 0.0, %v2205
        %v2207 = vpop.f32.mrb[0].mxu0
        %v2208 = vadd.f32 0.0, %v2207
        %2209 = vmatprep.mubr.f32.mxu0 0.0
        %2210 = vmatmul.mubr.f32.gmra.mrb[0].mxu0 %v1938
        %v2211 = vpop.f32.mrb[0].mxu0
        %v2212 = vadd.f32 0.0, %v2211
        %v2213 = vpop.f32.mrb[0].mxu0
        %v2214 = vadd.f32 0.0, %v2213
        %2215 = vmatprep.mubr.f32.mxu0 0.0
        %2216 = vmatmul.mubr.f32.gmra.mrb[0].mxu0 %v1939
        %v2217 = vpop.f32.mrb[0].mxu0
        %v2218 = vadd.f32 0.0, %v2217
        %v2219 = vpop.f32.mrb[0].mxu0
        %v2220 = vadd.f32 0.0, %v2219
        %2221 = vmatprep.mubr.f32.mxu0 0.0
        %2222 = vmatmul.mubr.f32.gmra.mrb[0].mxu0 %v1940
        %v2223 = vpop.f32.mrb[0].mxu0
        %v2224 = vadd.f32 0.0, %v2223
        %v2225 = vpop.f32.mrb[0].mxu0
        %v2226 = vadd.f32 0.0, %v2225
        %2227 = vmatprep.mubr.f32.mxu0 0.0
        %2228 = vmatmul.mubr.f32.gmra.mrb[0].mxu0 %v1941
        %v2229 = vpop.f32.mrb[0].mxu0
        %v2230 = vadd.f32 0.0, %v2229
        %v2231 = vpop.f32.mrb[0].mxu0
        %v2232 = vadd.f32 0.0, %v2231
        %2233 = vmatprep.mubr.f32.mxu0 0.0
        %2234 = vmatmul.mubr.f32.gmra.mrb[0].mxu0 %v1942
        %v2235 = vpop.f32.mrb[0].mxu0
        %v2236 = vadd.f32 0.0, %v2235
        %v2237 = vpop.f32.mrb[0].mxu0
        %v2238 = vadd.f32 0.0, %v2237
        %2239 = vmatprep.mubr.f32.mxu0 0.0
        %2240 = vmatmul.mubr.f32.gmra.mrb[0].mxu0 %v1943
        %v2241 = vpop.f32.mrb[0].mxu0
        %v2242 = vadd.f32 0.0, %v2241
        %v2243 = vpop.f32.mrb[0].mxu0
        %v2244 = vadd.f32 0.0, %v2243
        %2245 = vmatprep.mubr.f32.mxu0 0.0
        %2246 = vmatmul.mubr.f32.gmra.mrb[0].mxu0 %v1944
        %v2247 = vpop.f32.mrb[0].mxu0
        %v2248 = vadd.f32 0.0, %v2247
        %v2249 = vpop.f32.mrb[0].mxu0
        %v2250 = vadd.f32 0.0, %v2249
        %2251 = vmatprep.mubr.f32.mxu0 0.0
        %2252 = vmatmul.mubr.f32.gmra.mrb[0].mxu0 %v1945
        %v2253 = vpop.f32.mrb[0].mxu0
        %v2254 = vadd.f32 0.0, %v2253
        %v2255 = vpop.f32.mrb[0].mxu0
        %v2256 = vadd.f32 0.0, %v2255
        %2257 = vmatprep.mubr.f32.mxu0 0.0
        %2258 = vmatmul.mubr.f32.gmra.mrb[0].mxu0 %v1946
        %v2259 = vpop.f32.mrb[0].mxu0
        %v2260 = vadd.f32 0.0, %v2259
        %v2261 = vpop.f32.mrb[0].mxu0
        %v2262 = vadd.f32 0.0, %v2261
        %2263 = vmatprep.mubr.f32.mxu0 0.0
        %2264 = vmatmul.mubr.f32.gmra.mrb[0].mxu0 %v1947
        %v2265 = vpop.f32.mrb[0].mxu0
        %v2266 = vadd.f32 0.0, %v2265
        %v2267 = vpop.f32.mrb[0].mxu0
        %v2268 = vadd.f32 0.0, %v2267
        %2269 = vdwg.mxu0
        %v2270 = vmul.f32 %v1924, %v2015
        %v2271 = vmul.f32 %v1925, %v2017
        %v2272 = vmul.f32 %v1926, %v2176
        %v2273 = vmul.f32 %v1927, %v2178
        %v2274 = vmul.f32 %v1928, %v2021
        %v2275 = vmul.f32 %v1929, %v2023
        %v2276 = vmul.f32 %v1930, %v2182
        %v2277 = vmul.f32 %v1931, %v2184
        %v2278 = vmul.f32 %v1924, %v2027
        %v2279 = vmul.f32 %v1925, %v2029
        %v2280 = vmul.f32 %v1926, %v2188
        %v2281 = vmul.f32 %v1927, %v2190
        %v2282 = vmul.f32 %v1928, %v2033
        %v2283 = vmul.f32 %v1929, %v2035
        %v2284 = vmul.f32 %v1930, %v2194
        %v2285 = vmul.f32 %v1931, %v2196
        %v2286 = vmul.f32 %v1924, %v2039
        %v2287 = vmul.f32 %v1925, %v2041
        %v2288 = vmul.f32 %v1926, %v2200
        %v2289 = vmul.f32 %v1927, %v2202
        %v2290 = vmul.f32 %v1928, %v2045
        %v2291 = vmul.f32 %v1929, %v2047
        %v2292 = vmul.f32 %v1930, %v2206
        %v2293 = vmul.f32 %v1931, %v2208
        %v2294 = vmul.f32 %v1924, %v2051
        %v2295 = vmul.f32 %v1925, %v2053
        %v2296 = vmul.f32 %v1926, %v2212
        %v2297 = vmul.f32 %v1927, %v2214
        %v2298 = vmul.f32 %v1928, %v2057
        %v2299 = vmul.f32 %v1929, %v2059
        %v2300 = vmul.f32 %v1930, %v2218
        %v2301 = vmul.f32 %v1931, %v2220
        %v2302 = vmul.f32 %v1924, %v2063
        %v2303 = vmul.f32 %v1925, %v2065
        %v2304 = vmul.f32 %v1926, %v2224
        %v2305 = vmul.f32 %v1927, %v2226
        %v2306 = vmul.f32 %v1928, %v2069
        %v2307 = vmul.f32 %v1929, %v2071
        %v2308 = vmul.f32 %v1930, %v2230
        %v2309 = vmul.f32 %v1931, %v2232
        %v2310 = vmul.f32 %v1924, %v2075
        %v2311 = vmul.f32 %v1925, %v2077
        %v2312 = vmul.f32 %v1926, %v2236
        %v2313 = vmul.f32 %v1927, %v2238
        %v2314 = vmul.f32 %v1928, %v2081
        %v2315 = vmul.f32 %v1929, %v2083
        %v2316 = vmul.f32 %v1930, %v2242
        %v2317 = vmul.f32 %v1931, %v2244
        %v2318 = vmul.f32 %v1924, %v2087
        %v2319 = vmul.f32 %v1925, %v2089
        %v2320 = vmul.f32 %v1926, %v2248
        %v2321 = vmul.f32 %v1927, %v2250
        %v2322 = vmul.f32 %v1928, %v2093
        %v2323 = vmul.f32 %v1929, %v2095
        %v2324 = vmul.f32 %v1930, %v2254
        %v2325 = vmul.f32 %v1931, %v2256
        %v2326 = vmul.f32 %v1924, %v2099
        %v2327 = vmul.f32 %v1925, %v2101
        %v2328 = vmul.f32 %v1926, %v2260
        %v2329 = vmul.f32 %v1927, %v2262
        %v2330 = vmul.f32 %v1928, %v2105
        %v2331 = vmul.f32 %v1929, %v2107
        %v2332 = vmul.f32 %v1930, %v2266
        %v2333 = vmul.f32 %v1931, %v2268
        %v2334 = vld [vmem:[%s8] sm:$0xff]
        %v2335 = vld [vmem:[%s9] sm:$0xff]
        %2337 = vset.pattern.permute.xlu0 0
        %2338 = vperm.xlu0 %2337, %v2335
        %v2339 = vpop.permute.xlu0 %2338
        %v2342 = vsel %vm1683, %v2334, 0
        %2344 = vmatprep.subr.mxu0 %v1901
        %2345 = vmatpush1.msra.mxu0 %v1900
        %2346 = vmatprep.subr.mxu0 %v1905
        %2347 = vmatpush1.msra.mxu0 %v1904
        %2348 = vmatprep.subr.mxu0 0.0
        %2349 = vmatpush1.msra.mxu0 0.0
        %2350 = vmatprep.subr.mxu0 0.0
        %2351 = vmatpush1.msra.mxu0 0.0
        %2352 = vmatprep.subr.mxu0 0.0
        %2353 = vmatpush1.msra.mxu0 0.0
        %2354 = vmatprep.subr.mxu0 0.0
        %2355 = vmatpush1.msra.mxu0 0.0
        %2356 = vmatprep.subr.mxu0 0.0
        %2357 = vmatpush1.msra.mxu0 0.0
        %2358 = vmatprep.subr.mxu0 0.0
        %2359 = vmatpush1.msra.mxu0 0.0
        %2360 = vmatprep.subr.mxu0 0.0
        %2361 = vmatpush1.msra.mxu0 0.0
        %2362 = vmatprep.subr.mxu0 0.0
        %2363 = vmatpush1.msra.mxu0 0.0
        %2364 = vmatprep.subr.mxu0 0.0
        %2365 = vmatpush1.msra.mxu0 0.0
        %2366 = vmatprep.subr.mxu0 0.0
        %2367 = vmatpush1.msra.mxu0 0.0
        %2368 = vmatprep.subr.mxu0 0.0
        %2369 = vmatpush1.msra.mxu0 0.0
        %2370 = vmatprep.subr.mxu0 0.0
        %2371 = vmatpush1.msra.mxu0 0.0
        %2372 = vmatprep.subr.mxu0 0.0
        %2373 = vmatpush1.msra.mxu0 0.0
        %2374 = vmatprep.subr.mxu0 0.0
        %2375 = vmatpush1.msra.mxu0 0.0
        %2376 = vmatprep.subr.mxu0 0.0
        %2377 = vmatpush1.msra.mxu0 0.0
        %2378 = vmatprep.subr.mxu0 0.0
        %2379 = vmatpush1.msra.mxu0 0.0
        %2380 = vmatprep.subr.mxu0 0.0
        %2381 = vmatpush1.msra.mxu0 0.0
        %2382 = vmatprep.subr.mxu0 0.0
        %2383 = vmatpush1.msra.mxu0 0.0
        %2384 = vmatprep.subr.mxu0 0.0
        %2385 = vmatpush1.msra.mxu0 0.0
        %2386 = vmatprep.subr.mxu0 0.0
        %2387 = vmatpush1.msra.mxu0 0.0
        %2388 = vmatprep.subr.mxu0 0.0
        %2389 = vmatpush1.msra.mxu0 0.0
        %2390 = vmatprep.subr.mxu0 0.0
        %2391 = vmatpush1.msra.mxu0 0.0
        %2392 = vmatprep.subr.mxu0 0.0
        %2393 = vmatpush1.msra.mxu0 0.0
        %2394 = vmatprep.subr.mxu0 0.0
        %2395 = vmatpush1.msra.mxu0 0.0
        %2396 = vmatprep.subr.mxu0 0.0
        %2397 = vmatpush1.msra.mxu0 0.0
        %2398 = vmatprep.subr.mxu0 0.0
        %2399 = vmatpush1.msra.mxu0 0.0
        %2400 = vmatprep.subr.mxu0 0.0
        %2401 = vmatpush1.msra.mxu0 0.0
        %2402 = vmatprep.subr.mxu0 0.0
        %2403 = vmatpush1.msra.mxu0 0.0
        %2404 = vmatprep.subr.mxu0 0.0
        %2405 = vmatpush1.msra.mxu0 0.0
        %2406 = vmatprep.subr.mxu0 0.0
        %2407 = vmatpush1.msra.mxu0 0.0
        %2408 = vmatprep.mubr.f32.mxu0 0.0
        %2409 = vmatmul.mubr.f32.gmra.mrb[0].mxu0 %v2342
        %v2410 = vpop.f32.mrb[0].mxu0
        %v2411 = vadd.f32 %v2339, %v2410
        %v2412 = vpop.f32.mrb[0].mxu0
        %v2413 = vadd.f32 %v2339, %v2412
        %2414 = vdwg.mxu0
        %2415 = vmatprep.subr.mxu0 %v1903
        %2416 = vmatpush1.msra.mxu0 %v1902
        %2417 = vmatprep.subr.mxu0 %v1907
        %2418 = vmatpush1.msra.mxu0 %v1906
        %2419 = vmatprep.subr.mxu0 0.0
        %2420 = vmatpush1.msra.mxu0 0.0
        %2421 = vmatprep.subr.mxu0 0.0
        %2422 = vmatpush1.msra.mxu0 0.0
        %2423 = vmatprep.subr.mxu0 0.0
        %2424 = vmatpush1.msra.mxu0 0.0
        %2425 = vmatprep.subr.mxu0 0.0
        %2426 = vmatpush1.msra.mxu0 0.0
        %2427 = vmatprep.subr.mxu0 0.0
        %2428 = vmatpush1.msra.mxu0 0.0
        %2429 = vmatprep.subr.mxu0 0.0
        %2430 = vmatpush1.msra.mxu0 0.0
        %2431 = vmatprep.subr.mxu0 0.0
        %2432 = vmatpush1.msra.mxu0 0.0
        %2433 = vmatprep.subr.mxu0 0.0
        %2434 = vmatpush1.msra.mxu0 0.0
        %2435 = vmatprep.subr.mxu0 0.0
        %2436 = vmatpush1.msra.mxu0 0.0
        %2437 = vmatprep.subr.mxu0 0.0
        %2438 = vmatpush1.msra.mxu0 0.0
        %2439 = vmatprep.subr.mxu0 0.0
        %2440 = vmatpush1.msra.mxu0 0.0
        %2441 = vmatprep.subr.mxu0 0.0
        %2442 = vmatpush1.msra.mxu0 0.0
        %2443 = vmatprep.subr.mxu0 0.0
        %2444 = vmatpush1.msra.mxu0 0.0
        %2445 = vmatprep.subr.mxu0 0.0
        %2446 = vmatpush1.msra.mxu0 0.0
        %2447 = vmatprep.subr.mxu0 0.0
        %2448 = vmatpush1.msra.mxu0 0.0
        %2449 = vmatprep.subr.mxu0 0.0
        %2450 = vmatpush1.msra.mxu0 0.0
        %2451 = vmatprep.subr.mxu0 0.0
        %2452 = vmatpush1.msra.mxu0 0.0
        %2453 = vmatprep.subr.mxu0 0.0
        %2454 = vmatpush1.msra.mxu0 0.0
        %2455 = vmatprep.subr.mxu0 0.0
        %2456 = vmatpush1.msra.mxu0 0.0
        %2457 = vmatprep.subr.mxu0 0.0
        %2458 = vmatpush1.msra.mxu0 0.0
        %2459 = vmatprep.subr.mxu0 0.0
        %2460 = vmatpush1.msra.mxu0 0.0
        %2461 = vmatprep.subr.mxu0 0.0
        %2462 = vmatpush1.msra.mxu0 0.0
        %2463 = vmatprep.subr.mxu0 0.0
        %2464 = vmatpush1.msra.mxu0 0.0
        %2465 = vmatprep.subr.mxu0 0.0
        %2466 = vmatpush1.msra.mxu0 0.0
        %2467 = vmatprep.subr.mxu0 0.0
        %2468 = vmatpush1.msra.mxu0 0.0
        %2469 = vmatprep.subr.mxu0 0.0
        %2470 = vmatpush1.msra.mxu0 0.0
        %2471 = vmatprep.subr.mxu0 0.0
        %2472 = vmatpush1.msra.mxu0 0.0
        %2473 = vmatprep.subr.mxu0 0.0
        %2474 = vmatpush1.msra.mxu0 0.0
        %2475 = vmatprep.subr.mxu0 0.0
        %2476 = vmatpush1.msra.mxu0 0.0
        %2477 = vmatprep.subr.mxu0 0.0
        %2478 = vmatpush1.msra.mxu0 0.0
        %2479 = vmatprep.mubr.f32.mxu0 0.0
        %2480 = vmatmul.mubr.f32.gmra.mrb[0].mxu0 %v2342
        %v2481 = vpop.f32.mrb[0].mxu0
        %v2482 = vadd.f32 %v2339, %v2481
        %v2483 = vpop.f32.mrb[0].mxu0
        %v2484 = vadd.f32 %v2339, %v2483
        %2485 = vdwg.mxu0
        %v2486 = vadd.f32 %v812, %v2411
        %v2487 = vadd.f32 %v814, %v2413
        %v2488 = vadd.f32 %v895, %v2482
        %v2489 = vadd.f32 %v897, %v2484
        %2490 = vst [vmem:[%s454] sm:$0xff] %v2486
        %2491 = vst [vmem:[%s454 + $0x8] sm:$0xff] %v2487
        %2492 = vst [vmem:[%s454 + $0x10] sm:$0xff] %v2488
        %2493 = vst [vmem:[%s454 + $0x18] sm:$0xff] %v2489
        %v2494 = vld [vmem:[%s10] sm:$0xff]
        %2495 = vmatprep.subr.mxu0 %v2271
        %2496 = vmatpush1.msra.mxu0 %v2270
        %2497 = vmatprep.subr.mxu0 %v2275
        %2498 = vmatpush1.msra.mxu0 %v2274
        %2499 = vmatprep.subr.mxu0 %v2279
        %2500 = vmatpush1.msra.mxu0 %v2278
        %2501 = vmatprep.subr.mxu0 %v2283
        %2502 = vmatpush1.msra.mxu0 %v2282
        %2503 = vmatprep.subr.mxu0 %v2287
        %2504 = vmatpush1.msra.mxu0 %v2286
        %2505 = vmatprep.subr.mxu0 %v2291
        %2506 = vmatpush1.msra.mxu0 %v2290
        %2507 = vmatprep.subr.mxu0 %v2295
        %2508 = vmatpush1.msra.mxu0 %v2294
        %2509 = vmatprep.subr.mxu0 %v2299
        %2510 = vmatpush1.msra.mxu0 %v2298
        %2511 = vmatprep.subr.mxu0 %v2303
        %2512 = vmatpush1.msra.mxu0 %v2302
        %2513 = vmatprep.subr.mxu0 %v2307
        %2514 = vmatpush1.msra.mxu0 %v2306
        %2515 = vmatprep.subr.mxu0 %v2311
        %2516 = vmatpush1.msra.mxu0 %v2310
        %2517 = vmatprep.subr.mxu0 %v2315
        %2518 = vmatpush1.msra.mxu0 %v2314
        %2519 = vmatprep.subr.mxu0 %v2319
        %2520 = vmatpush1.msra.mxu0 %v2318
        %2521 = vmatprep.subr.mxu0 %v2323
        %2522 = vmatpush1.msra.mxu0 %v2322
        %2523 = vmatprep.subr.mxu0 %v2327
        %2524 = vmatpush1.msra.mxu0 %v2326
        %2525 = vmatprep.subr.mxu0 %v2331
        %2526 = vmatpush1.msra.mxu0 %v2330
        %2527 = vmatprep.subr.mxu0 0.0
        %2528 = vmatpush1.msra.mxu0 0.0
        %2529 = vmatprep.subr.mxu0 0.0
        %2530 = vmatpush1.msra.mxu0 0.0
        %2531 = vmatprep.subr.mxu0 0.0
        %2532 = vmatpush1.msra.mxu0 0.0
        %2533 = vmatprep.subr.mxu0 0.0
        %2534 = vmatpush1.msra.mxu0 0.0
        %2535 = vmatprep.subr.mxu0 0.0
        %2536 = vmatpush1.msra.mxu0 0.0
        %2537 = vmatprep.subr.mxu0 0.0
        %2538 = vmatpush1.msra.mxu0 0.0
        %2539 = vmatprep.subr.mxu0 0.0
        %2540 = vmatpush1.msra.mxu0 0.0
        %2541 = vmatprep.subr.mxu0 0.0
        %2542 = vmatpush1.msra.mxu0 0.0
        %2543 = vmatprep.subr.mxu0 0.0
        %2544 = vmatpush1.msra.mxu0 0.0
        %2545 = vmatprep.subr.mxu0 0.0
        %2546 = vmatpush1.msra.mxu0 0.0
        %2547 = vmatprep.subr.mxu0 0.0
        %2548 = vmatpush1.msra.mxu0 0.0
        %2549 = vmatprep.subr.mxu0 0.0
        %2550 = vmatpush1.msra.mxu0 0.0
        %2551 = vmatprep.subr.mxu0 0.0
        %2552 = vmatpush1.msra.mxu0 0.0
        %2553 = vmatprep.subr.mxu0 0.0
        %2554 = vmatpush1.msra.mxu0 0.0
        %2555 = vmatprep.subr.mxu0 0.0
        %2556 = vmatpush1.msra.mxu0 0.0
        %2557 = vmatprep.subr.mxu0 0.0
        %2558 = vmatpush1.msra.mxu0 0.0
        %2559 = vmatprep.mubr.f32.mxu0 0.0
        %2560 = vmatmul.mubr.f32.gmra.mrb[0].mxu0 %v2494
        %v2561 = vpop.f32.mrb[0].mxu0
        %v2562 = vadd.f32 1.0, %v2561
        %v2563 = vpop.f32.mrb[0].mxu0
        %v2564 = vadd.f32 1.0, %v2563
        %2565 = vdwg.mxu0
        %2566 = vmatprep.subr.mxu0 %v2273
        %2567 = vmatpush1.msra.mxu0 %v2272
        %2568 = vmatprep.subr.mxu0 %v2277
        %2569 = vmatpush1.msra.mxu0 %v2276
        %2570 = vmatprep.subr.mxu0 %v2281
        %2571 = vmatpush1.msra.mxu0 %v2280
        %2572 = vmatprep.subr.mxu0 %v2285
        %2573 = vmatpush1.msra.mxu0 %v2284
        %2574 = vmatprep.subr.mxu0 %v2289
        %2575 = vmatpush1.msra.mxu0 %v2288
        %2576 = vmatprep.subr.mxu0 %v2293
        %2577 = vmatpush1.msra.mxu0 %v2292
        %2578 = vmatprep.subr.mxu0 %v2297
        %2579 = vmatpush1.msra.mxu0 %v2296
        %2580 = vmatprep.subr.mxu0 %v2301
        %2581 = vmatpush1.msra.mxu0 %v2300
        %2582 = vmatprep.subr.mxu0 %v2305
        %2583 = vmatpush1.msra.mxu0 %v2304
        %2584 = vmatprep.subr.mxu0 %v2309
        %2585 = vmatpush1.msra.mxu0 %v2308
        %2586 = vmatprep.subr.mxu0 %v2313
        %2587 = vmatpush1.msra.mxu0 %v2312
        %2588 = vmatprep.subr.mxu0 %v2317
        %2589 = vmatpush1.msra.mxu0 %v2316
        %2590 = vmatprep.subr.mxu0 %v2321
        %2591 = vmatpush1.msra.mxu0 %v2320
        %2592 = vmatprep.subr.mxu0 %v2325
        %2593 = vmatpush1.msra.mxu0 %v2324
        %2594 = vmatprep.subr.mxu0 %v2329
        %2595 = vmatpush1.msra.mxu0 %v2328
        %2596 = vmatprep.subr.mxu0 %v2333
        %2597 = vmatpush1.msra.mxu0 %v2332
        %2598 = vmatprep.subr.mxu0 0.0
        %2599 = vmatpush1.msra.mxu0 0.0
        %2600 = vmatprep.subr.mxu0 0.0
        %2601 = vmatpush1.msra.mxu0 0.0
        %2602 = vmatprep.subr.mxu0 0.0
        %2603 = vmatpush1.msra.mxu0 0.0
        %2604 = vmatprep.subr.mxu0 0.0
        %2605 = vmatpush1.msra.mxu0 0.0
        %2606 = vmatprep.subr.mxu0 0.0
        %2607 = vmatpush1.msra.mxu0 0.0
        %2608 = vmatprep.subr.mxu0 0.0
        %2609 = vmatpush1.msra.mxu0 0.0
        %2610 = vmatprep.subr.mxu0 0.0
        %2611 = vmatpush1.msra.mxu0 0.0
        %2612 = vmatprep.subr.mxu0 0.0
        %2613 = vmatpush1.msra.mxu0 0.0
        %2614 = vmatprep.subr.mxu0 0.0
        %2615 = vmatpush1.msra.mxu0 0.0
        %2616 = vmatprep.subr.mxu0 0.0
        %2617 = vmatpush1.msra.mxu0 0.0
        %2618 = vmatprep.subr.mxu0 0.0
        %2619 = vmatpush1.msra.mxu0 0.0
        %2620 = vmatprep.subr.mxu0 0.0
        %2621 = vmatpush1.msra.mxu0 0.0
        %2622 = vmatprep.subr.mxu0 0.0
        %2623 = vmatpush1.msra.mxu0 0.0
        %2624 = vmatprep.subr.mxu0 0.0
        %2625 = vmatpush1.msra.mxu0 0.0
        %2626 = vmatprep.subr.mxu0 0.0
        %2627 = vmatpush1.msra.mxu0 0.0
        %2628 = vmatprep.subr.mxu0 0.0
        %2629 = vmatpush1.msra.mxu0 0.0
        %2630 = vmatprep.mubr.f32.mxu0 0.0
        %2631 = vmatmul.mubr.f32.gmra.mrb[0].mxu0 %v2494
        %v2632 = vpop.f32.mrb[0].mxu0
        %v2633 = vadd.f32 1.0, %v2632
        %v2634 = vpop.f32.mrb[0].mxu0
        %v2635 = vadd.f32 1.0, %v2634
        %2636 = vdwg.mxu0
        %v2637 = vand.u32 2147483647, %v2562
        %v2638 = vand.u32 2147483647, %v2564
        %v2639 = vand.u32 2147483647, %v2633
        %v2640 = vand.u32 2147483647, %v2635
        %v2641 = vlog2.pop %v2637
        %v2642 = vmul.f32 %v2641, 0.6931472
        %v2643 = vlog2.pop %v2638
        %v2644 = vmul.f32 %v2643, 0.6931472
        %v2645 = vlog2.pop %v2639
        %v2646 = vmul.f32 %v2645, 0.6931472
        %v2647 = vlog2.pop %v2640
        %v2648 = vmul.f32 %v2647, 0.6931472
        %v2649 = vrot.slane %v2642, 4
        %v2650 = vadd.f32 %v2642, %v2649
        %v2651 = vrot.slane %v2650, 2
        %v2652 = vadd.f32 %v2650, %v2651
        %v2653 = vrot.slane %v2652, 1
        %v2654 = vadd.f32 %v2652, %v2653
        %v2655 = vrot.slane %v2644, 4
        %v2656 = vadd.f32 %v2644, %v2655
        %v2657 = vrot.slane %v2656, 2
        %v2658 = vadd.f32 %v2656, %v2657
        %v2659 = vrot.slane %v2658, 1
        %v2660 = vadd.f32 %v2658, %v2659
        %v2661 = vrot.slane %v2646, 4
        %v2662 = vadd.f32 %v2646, %v2661
        %v2663 = vrot.slane %v2662, 2
        %v2664 = vadd.f32 %v2662, %v2663
        %v2665 = vrot.slane %v2664, 1
        %v2666 = vadd.f32 %v2664, %v2665
        %v2667 = vrot.slane %v2648, 4
        %v2668 = vadd.f32 %v2648, %v2667
        %v2669 = vrot.slane %v2668, 2
        %v2670 = vadd.f32 %v2668, %v2669
        %v2671 = vrot.slane %v2670, 1
        %v2672 = vadd.f32 %v2670, %v2671
        %v2677 = vcombine.low %v2654, %v2660
        %v2678 = vcombine.low %v2666, %v2672
        %v2680 = vunpack.c.l.s4 1966171168
        %v2681 = vunpack.c.0.s8 %v2680
        %v2682 = vlaneseq
        %v2683 = vshrl.u32 %v2682, 7
        %v2684 = vsub.s32 %v2681, %v2683
        %v2685 = vrot.slane %v2677, %v2684
        %v2687 = vunpack.c.l.s4 1966171168
        %v2688 = vunpack.c.0.s8 %v2687
        %v2689 = vlaneseq
        %v2690 = vshrl.u32 %v2689, 7
        %v2691 = vsub.s32 %v2688, %v2690
        %v2692 = vrot.slane %v2678, %v2691
        %v2693 = vcombine.low %v2685, %v2692
        %v2695 = vunpack.c.l.s4 1966171168
        %v2696 = vunpack.c.0.s8 %v2695
        %v2697 = vlaneseq
        %v2698 = vshrl.u32 %v2697, 7
        %v2699 = vsub.s32 %v2696, %v2698
        %v2700 = vrot.slane %v2693, %v2699
        %v2702 = vlaneseq
        %vm2703 = vcmp.ge.s32.totalorder %v2702, 0
        %vm2704 = vcmp.lt.s32.totalorder %v2702, 512
        %vm2705 = vmand %vm2703, %vm2704
        %2706 = vst.msk [vmem:[%s461] sm:$0xf] %vm2705, %v2700
        %s2707 = sand.u32 %s301, 1
        %s2708 = scalar_lea.sflag [#allocation3], %s2707
        %s2709 = sand.u32 %s301, 1
        %s2710 = smul.addr %s2709, 32
        %s2711 = scalar_lea.vmem [#allocation2], %s2710
        %s2712 = sand.u32 %s327, 1
        %s2713 = scalar_lea.sflag [#allocation5], %s2712
        %s2714 = sand.u32 %s327, 1
        %s2715 = smul.addr %s2714, 4
        %s2716 = scalar_lea.vmem [#allocation4], %s2715
        // Predicated region
        $region69: #{tpu_custom_call.1} parent=67 // pred_check
          %p2717 = pneg %p311
        $region70: #{tpu_custom_call.1} parent=67 // pred_check_branch
          %2719 = sbr.rel (%p2717) target = $region72
        $region71: #{tpu_custom_call.1} parent=67 // pred_region
          %s2720 = smul.u32 4, %s31
          %s2722 = ssub.s32 512, 512
          %2723 = vsyncadd %s2708, %s2722
          %s2724 = smul.addr %s2720, 128
          %s2725 = scalar_lea.hbm %s12, %s2724
          %s2727 = sshll.u32 %s2711, 4
          %s2728 = int_to_ptr.vmem [resolvable:$true] %s2727
          %2730 = dma.vmem_to_hbm [thread:$0]  %s2728, 512, %s2725, %s2708
        $region72: #{tpu_custom_call.1} parent=67 // pred_fallthru
          _
        // Predicated region
        $region73: #{tpu_custom_call.1} parent=67 // pred_check
          %p2731 = pneg %p337
        $region74: #{tpu_custom_call.1} parent=67 // pred_check_branch
          %2733 = sbr.rel (%p2731) target = $region76
        $region75: #{tpu_custom_call.1} parent=67 // pred_region
          %s2734 = smul.u32 4, %s31
          %s2736 = ssub.s32 64, 64
          %2737 = vsyncadd %s2713, %s2736
          %s2738 = smul.addr %s2734, 16
          %s2739 = scalar_lea.hbm %s13, %s2738
          %s2741 = sshll.u32 %s2716, 4
          %s2742 = int_to_ptr.vmem [resolvable:$true] %s2741
          %2744 = dma.vmem_to_hbm [thread:$0]  %s2742, 64, %s2739, %s2713
        $region76: #{tpu_custom_call.1} parent=67 // pred_fallthru
          _
      $region68: #{tpu_custom_call.1} parent=5 // pred_fallthru
        _
      %p2745 = scmp.le.s32.totalorder 2, %s26
      // Predicated region
      $region77: #{tpu_custom_call.1} parent=5 // pred_check
        %p2746 = pneg %p2745
      $region78: #{tpu_custom_call.1} parent=5 // pred_check_branch
        %2748 = sbr.rel (%p2746) target = $region80
      $region79: #{tpu_custom_call.1} parent=5 // pred_region
        %s2749 = ssub.s32 %s26, 2
        // Predicated region
        $region81: #{tpu_custom_call.1} parent=79 // pred_check
          %p2750 = pneg %p317
        $region82: #{tpu_custom_call.1} parent=79 // pred_check_branch
          %2752 = sbr.rel (%p2750) target = $region84
        $region83: #{tpu_custom_call.1} parent=79 // pred_region
          %s2753 = sand.u32 %s302, 1
          %s2754 = scalar_lea.sflag [#allocation3], %s2753
          %s2755 = sand.u32 %s302, 1
          %s2756 = smul.addr %s2755, 32
          %s2757 = scalar_lea.vmem [#allocation2], %s2756
          %2758 = dma.done %s2754, 512
        $region84: #{tpu_custom_call.1} parent=79 // pred_fallthru
          _
        // Predicated region
        $region85: #{tpu_custom_call.1} parent=79 // pred_check
          %p2759 = pneg %p343
        $region86: #{tpu_custom_call.1} parent=79 // pred_check_branch
          %2761 = sbr.rel (%p2759) target = $region88
        $region87: #{tpu_custom_call.1} parent=79 // pred_region
          %s2762 = sand.u32 %s328, 1
          %s2763 = scalar_lea.sflag [#allocation5], %s2762
          %s2764 = sand.u32 %s328, 1
          %s2765 = smul.addr %s2764, 4
          %s2766 = scalar_lea.vmem [#allocation4], %s2765
          %2767 = dma.done %s2763, 64
        $region88: #{tpu_custom_call.1} parent=79 // pred_fallthru
          _
      $region80: #{tpu_custom_call.1} parent=5 // pred_fallthru
        _
    $region6: #{tpu_custom_call.1} parent=1 // loop_footer
      %s30 = sadd.s32 1, %s26
    $region7: #{tpu_custom_call.1} parent=1 // loop_footer_branch
      %25 = sbr.rel target = $region3
    $region8: #{tpu_custom_call.1} parent=1 // loop_exit
      _
    %2768 = vsyncpa [#allocation3], 1
    %s2769 = scalar_lea.sflag [#allocation3], 1
    %2770 = vsyncpa %s2769, 1
    %2771 = vsyncpa [#allocation5], 1
    %s2772 = scalar_lea.sflag [#allocation5], 1
    %2773 = vsyncpa %s2772, 1

</llo_original>
